<compile_context>
chip_gen: v5e
topology: v5e:2x2
jax: 0.10.0
libtpu: 0.0.40
codegen_flags: <defaults>
</compile_context>

<pallas_src>
import functools
import math

import jax
import jax.numpy as jnp
import numpy as np
from jax import lax
from jax.experimental import pallas as pl
from jax.experimental.pallas import tpu as pltpu

N_COS = 64    # IQN's n_cos
LANE = 128
SUBLANE = 8


def _round_up(x, m):
    return ((x + m - 1) // m) * m


def _cdiv(a, b):
    return -(-a // b)


def _pad2(a, rows, cols):
    r, c = a.shape
    return jnp.pad(a, ((0, rows - r), (0, cols - c)))


def iqn_kernel(x_ref, taus_ref,
               w_head, b_head, w_cos, b_cos,
               w_h1, b_h1, w_h2, b_h2, w_out, b_out,
               out_ref, *, n_tau):
    tile_b = x_ref.shape[0]
    rows = tile_b * n_tau
    l_pad = w_h1.shape[0]

    # pis = [0, pi, 2*pi, ...] built in-kernel (no HBM input for a constant).
    pis = (lax.broadcasted_iota(jnp.int32, (1, N_COS), 1).astype(jnp.float32)
           * jnp.float32(np.pi))

    # State embedding computed ONCE per state row (tile_b rows) - the T-fold
    # replication happens below as a cheap VPU broadcast, not as MXU/HBM work.
    x = jnp.dot(x_ref[...], w_head[...],
                preferred_element_type=jnp.float32) + b_head[...]
    x = jnp.maximum(x, 0.0)                                    # (tile_b, L_pad)

    # Cosine embedding over all tile_b * n_tau quantile rows; cos on the EUP.
    cos = jnp.cos(taus_ref[...].astype(jnp.float32) * pis)     # (rows, N_COS)
    cos_x = jnp.dot(cos.astype(w_cos.dtype), w_cos[...],
                    preferred_element_type=jnp.float32) + b_cos[...]
    cos_x = jnp.maximum(cos_x, 0.0)                             # (rows, L_pad)

    # Elementwise merge: broadcast each state embedding across its n_tau rows.
    h = (x.reshape(tile_b, 1, l_pad)
         * cos_x.reshape(tile_b, n_tau, l_pad)).reshape(rows, l_pad)

    h = jnp.maximum(jnp.dot(h.astype(w_h1.dtype), w_h1[...],
                            preferred_element_type=jnp.float32) + b_h1[...], 0.0)
    h = jnp.maximum(jnp.dot(h.astype(w_h2.dtype), w_h2[...],
                            preferred_element_type=jnp.float32) + b_h2[...], 0.0)
    out = jnp.dot(h.astype(w_out.dtype), w_out[...],
                  preferred_element_type=jnp.float32) + b_out[...]
    # Narrow (rows, A) store: masked vst, but ~32x fewer HBM write bytes than
    # a 128-lane padded slab.
    out_ref[...] = out.astype(out_ref.dtype)


def init_linear(key, in_dim, out_dim):
    """Deterministic torch.nn.Linear-style init; returns (W[in,out], b[1,out])."""
    k = 1.0 / math.sqrt(in_dim)
    kw, kb = jax.random.split(key)
    w = jax.random.uniform(kw, (in_dim, out_dim), jnp.float32, -k, k)
    b = jax.random.uniform(kb, (1, out_dim), jnp.float32, -k, k)
    return w, b


def make_params(key, state_size, action_size, layer_size):
    keys = jax.random.split(key, 5)
    p = {}
    p["w_head"], p["b_head"] = init_linear(keys[0], state_size, layer_size)
    p["w_cos"], p["b_cos"] = init_linear(keys[1], N_COS, layer_size)
    p["w_h1"], p["b_h1"] = init_linear(keys[2], layer_size, layer_size)
    p["w_h2"], p["b_h2"] = init_linear(keys[3], layer_size, layer_size)
    p["w_out"], p["b_out"] = init_linear(keys[4], layer_size, action_size)
    return p


def prepare_params(params, compute_dtype=jnp.bfloat16):
    """One-time weight padding + casting (hoisted out of the forward pass).

    Hidden widths are zero-padded to 128 lanes (exact: ReLU(0)=0 and padded
    weight rows/cols are 0).  The output weight keeps its true narrow
    N=action_size so the kernel's output HBM stream is not 128-lane padded.
    Weights are stored in `compute_dtype` (default bf16: the MXU is bf16-native
    on v5e/v6e/v7x; accumulation stays f32).  Biases stay f32.
    """
    S, L = params["w_head"].shape
    A = params["w_out"].shape[1]
    L_pad = _round_up(L, LANE)
    prepped = {
        "w_head": _pad2(params["w_head"], S, L_pad).astype(compute_dtype),
        "b_head": _pad2(params["b_head"], 1, L_pad).astype(jnp.float32),
        "w_cos": _pad2(params["w_cos"], N_COS, L_pad).astype(compute_dtype),
        "b_cos": _pad2(params["b_cos"], 1, L_pad).astype(jnp.float32),
        "w_h1": _pad2(params["w_h1"], L_pad, L_pad).astype(compute_dtype),
        "b_h1": _pad2(params["b_h1"], 1, L_pad).astype(jnp.float32),
        "w_h2": _pad2(params["w_h2"], L_pad, L_pad).astype(compute_dtype),
        "b_h2": _pad2(params["b_h2"], 1, L_pad).astype(jnp.float32),
        "w_out": _pad2(params["w_out"], L_pad, A).astype(compute_dtype),
        "b_out": params["b_out"].astype(jnp.float32),
    }
    meta = dict(state_size=S, action_size=A, layer_size=L,
                layer_size_pad=L_pad, compute_dtype=compute_dtype)
    return prepped, meta


def iqn_forward(prepped, meta, inputs, taus, *, row_tile=512):
    """inputs: (B, state_size) f32; taus: (B, num_tau, 1) f32 (already * cvar).
    Returns (quantiles (B, num_tau, action_size) f32, taus)."""
    B, S = inputs.shape
    T = taus.shape[1]
    A = meta["action_size"]
    L_pad = meta["layer_size_pad"]
    cdt = meta["compute_dtype"]
    assert S == meta["state_size"]

    # State tile: a multiple of 8 states, targeting ~row_tile (state, tau) rows
    # per grid step; each step processes tile_b states x all T taus.
    tile_b = _round_up(min(max(1, row_tile // max(T, 1)), B), SUBLANE)
    b_pad8 = _round_up(B, SUBLANE)
    # v7x megacore: ensure the "parallel" grid has >= 2 steps when there is
    # enough work for both TensorCores.  Harmless on single-TC v5e/v6e.
    if b_pad8 // tile_b < 2 and b_pad8 >= 2 * SUBLANE:
        tile_b = _round_up(_cdiv(B, 2), SUBLANE)
    B_pad = _round_up(B, tile_b)
    grid = (B_pad // tile_b,)
    rows_blk = tile_b * T

    x_pad = inputs
    taus_flat = taus.reshape(B * T, 1).astype(jnp.float32)
    if B_pad > B:
        x_pad = jnp.pad(x_pad, ((0, B_pad - B), (0, 0)))
        taus_flat = jnp.pad(taus_flat, ((0, (B_pad - B) * T), (0, 0)))
    x_pad = x_pad.astype(cdt)

    weight_names = ["w_head", "b_head", "w_cos", "b_cos",
                    "w_h1", "b_h1", "w_h2", "b_h2", "w_out", "b_out"]
    weights = [prepped[n] for n in weight_names]

    # VMEM budget: weights (counted double-buffered, conservative since their
    # block index is constant) + activation tiles + f32 intermediates.  Request
    # at least the scoped default and never more than v7x's 64 MiB physical
    # VMEM; for very large layer_size keep compute_dtype=bf16 for headroom.
    weight_bytes = sum(int(np.prod(w.shape)) * w.dtype.itemsize for w in weights)
    act_bytes = rows_blk * (4 + 4 * A) + tile_b * S * x_pad.dtype.itemsize
    inter_bytes = 6 * rows_blk * L_pad * 4
    vmem_limit = int(min(max(2 * (weight_bytes + act_bytes) + inter_bytes,
                             32 << 20), 64 << 20))

    def row_spec(nrows, ncols):
        return pl.BlockSpec((nrows, ncols), lambda i: (i, 0))

    def resident(arr):
        # Constant block index across the grid -> stays VMEM-resident.
        return pl.BlockSpec(arr.shape, lambda i: (0, 0))

    out = pl.pallas_call(
        functools.partial(iqn_kernel, n_tau=T),
        out_shape=jax.ShapeDtypeStruct((B_pad * T, A), jnp.float32),
        grid=grid,
        in_specs=[row_spec(tile_b, S), row_spec(rows_blk, 1)]
                + [resident(w) for w in weights],
        out_specs=row_spec(rows_blk, A),
        compiler_params=pltpu.CompilerParams(
            dimension_semantics=("parallel",),   # v7x: split state tiles over 2 TCs
            vmem_limit_bytes=vmem_limit),
    )(x_pad, taus_flat, *weights)

    return out[:B * T].reshape(B, T, A), taus


def iqn_forward_ref(params, inputs, taus):
    """Pure-JAX reference mirroring the PyTorch forward semantics."""
    B, _ = inputs.shape
    T = taus.shape[1]
    L = params["w_head"].shape[1]
    A = params["w_out"].shape[1]
    pis = (jnp.arange(N_COS, dtype=jnp.float32) * jnp.float32(np.pi)).reshape(1, 1, N_COS)

    x = jax.nn.relu(inputs @ params["w_head"] + params["b_head"])          # (B, L)
    cos = jnp.cos(taus * pis).reshape(B * T, N_COS)                        # (B*T, 64)
    cos_x = jax.nn.relu(cos @ params["w_cos"] + params["b_cos"]).reshape(B, T, L)
    h = (x[:, None, :] * cos_x).reshape(B * T, L)
    h = jax.nn.relu(h @ params["w_h1"] + params["b_h1"])
    h = jax.nn.relu(h @ params["w_h2"] + params["b_h2"])
    out = h @ params["w_out"] + params["b_out"]
    return out.reshape(B, T, A), taus


if __name__ == "__main__":
    # Small, module-consistent shapes.
    batch = 2
    state_size = 16
    action_size = 4
    layer_size = 32
    num_tau = 8
    cvar = 1.0

    key = jax.random.PRNGKey(0)
    k_param, k_x, k_tau = jax.random.split(key, 3)

    params = make_params(k_param, state_size, action_size, layer_size)
    inputs = jax.random.normal(k_x, (batch, state_size), jnp.float32)
    taus = jax.random.uniform(k_tau, (batch, num_tau, 1), jnp.float32) * cvar

    ref_q, _ = iqn_forward_ref(params, inputs, taus)

    # f32 path: tight tolerance against the reference.
    prepped32, meta32 = prepare_params(params, compute_dtype=jnp.float32)
    q32, taus_out = iqn_forward(prepped32, meta32, inputs, taus)
    q32 = jax.block_until_ready(q32)
    np.testing.assert_allclose(np.asarray(q32), np.asarray(ref_q),
                               rtol=1e-5, atol=1e-5)

    # Default bf16 path (f32 accumulation): looser tolerance.
    prepped16, meta16 = prepare_params(params)
    q16, _ = iqn_forward(prepped16, meta16, inputs, taus)
    q16 = jax.block_until_ready(q16)
    np.testing.assert_allclose(np.asarray(q16), np.asarray(ref_q),
                               rtol=5e-2, atol=5e-2)

    assert q32.shape == (batch, num_tau, action_size)
    assert taus_out.shape == (batch, num_tau, 1)
    print("KERNEL_OK")
</pallas_src>

<mosaic_0001>
module attributes {stable_mosaic.version = 11 : i64} {
  func.func @iqn_kernel(%arg0: i32, %arg1: memref<8x16xf32, #tpu.memory_space<vmem>>, %arg2: memref<64x1xf32, #tpu.memory_space<vmem>>, %arg3: memref<16x128xf32, #tpu.memory_space<vmem>>, %arg4: memref<1x128xf32, #tpu.memory_space<vmem>>, %arg5: memref<64x128xf32, #tpu.memory_space<vmem>>, %arg6: memref<1x128xf32, #tpu.memory_space<vmem>>, %arg7: memref<128x128xf32, #tpu.memory_space<vmem>>, %arg8: memref<1x128xf32, #tpu.memory_space<vmem>>, %arg9: memref<128x128xf32, #tpu.memory_space<vmem>>, %arg10: memref<1x128xf32, #tpu.memory_space<vmem>>, %arg11: memref<128x4xf32, #tpu.memory_space<vmem>>, %arg12: memref<1x4xf32, #tpu.memory_space<vmem>>, %arg13: memref<64x4xf32, #tpu.memory_space<vmem>>) attributes {dimension_semantics = [#tpu.dimension_semantics<parallel>], iteration_bounds = array<i64: 1>, scalar_prefetch = 0 : i64, scratch_operands = 0 : i64, tpu.core_type = #tpu.core_type<tc>, window_params = [{transform_indices = @transform_0, window_bounds = array<i64: 8, 16>}, {transform_indices = @transform_1, window_bounds = array<i64: 64, 1>}, {pipeline_mode = #tpu.pipeline_mode<synchronous>, transform_indices = @transform_2, window_bounds = array<i64: 16, 128>}, {pipeline_mode = #tpu.pipeline_mode<synchronous>, transform_indices = @transform_3, window_bounds = array<i64: 1, 128>}, {pipeline_mode = #tpu.pipeline_mode<synchronous>, transform_indices = @transform_4, window_bounds = array<i64: 64, 128>}, {pipeline_mode = #tpu.pipeline_mode<synchronous>, transform_indices = @transform_5, window_bounds = array<i64: 1, 128>}, {pipeline_mode = #tpu.pipeline_mode<synchronous>, transform_indices = @transform_6, window_bounds = array<i64: 128, 128>}, {pipeline_mode = #tpu.pipeline_mode<synchronous>, transform_indices = @transform_7, window_bounds = array<i64: 1, 128>}, {pipeline_mode = #tpu.pipeline_mode<synchronous>, transform_indices = @transform_8, window_bounds = array<i64: 128, 128>}, {pipeline_mode = #tpu.pipeline_mode<synchronous>, transform_indices = @transform_9, window_bounds = array<i64: 1, 128>}, {pipeline_mode = #tpu.pipeline_mode<synchronous>, transform_indices = @transform_10, window_bounds = array<i64: 128, 4>}, {pipeline_mode = #tpu.pipeline_mode<synchronous>, transform_indices = @transform_11, window_bounds = array<i64: 1, 4>}, {transform_indices = @transform_12, window_bounds = array<i64: 64, 4>}]} {
    %0 = tpu.iota {dimensions = array<i32: 1>} : vector<1x64xi32>
    %1 = arith.sitofp %0 : vector<1x64xi32> to vector<1x64xf32>
    %cst = arith.constant 3.14159274 : f32
    %2 = vector.broadcast %cst : f32 to vector<1x64xf32>
    %3 = arith.mulf %1, %2 : vector<1x64xf32>
    %c0 = arith.constant 0 : index
    %c0_0 = arith.constant 0 : index
    %4 = vector.load %arg1[%c0, %c0_0] : memref<8x16xf32, #tpu.memory_space<vmem>>, vector<8x16xf32>
    %c0_1 = arith.constant 0 : index
    %c0_2 = arith.constant 0 : index
    %5 = vector.load %arg3[%c0_1, %c0_2] : memref<16x128xf32, #tpu.memory_space<vmem>>, vector<16x128xf32>
    %cst_3 = arith.constant dense<0.000000e+00> : vector<8x128xf32>
    %6 = tpu.matmul %4, %5, %cst_3 {dimension_numbers = #tpu.dot_dimension_numbers<[1], [0], [0], [1], [0, 0, 1, 1], [], []>} : vector<8x16xf32>, vector<16x128xf32>, vector<8x128xf32> -> vector<8x128xf32>
    %c0_4 = arith.constant 0 : index
    %c0_5 = arith.constant 0 : index
    %7 = vector.load %arg4[%c0_4, %c0_5] : memref<1x128xf32, #tpu.memory_space<vmem>>, vector<1x128xf32>
    %8 = vector.broadcast %7 : vector<1x128xf32> to vector<8x128xf32>
    %9 = arith.addf %6, %8 : vector<8x128xf32>
    %cst_6 = arith.constant 0.000000e+00 : f32
    %10 = vector.broadcast %cst_6 : f32 to vector<8x128xf32>
    %11 = arith.maximumf %9, %10 : vector<8x128xf32>
    %c0_7 = arith.constant 0 : index
    %c0_8 = arith.constant 0 : index
    %12 = vector.load %arg2[%c0_7, %c0_8] : memref<64x1xf32, #tpu.memory_space<vmem>>, vector<64x1xf32>
    %13 = vector.broadcast %12 : vector<64x1xf32> to vector<64x64xf32>
    %14 = vector.broadcast %3 : vector<1x64xf32> to vector<64x64xf32>
    %15 = arith.mulf %13, %14 : vector<64x64xf32>
    %16 = math.cos %15 : vector<64x64xf32>
    %c0_9 = arith.constant 0 : index
    %c0_10 = arith.constant 0 : index
    %17 = vector.load %arg5[%c0_9, %c0_10] : memref<64x128xf32, #tpu.memory_space<vmem>>, vector<64x128xf32>
    %cst_11 = arith.constant dense<0.000000e+00> : vector<64x128xf32>
    %18 = tpu.matmul %16, %17, %cst_11 {dimension_numbers = #tpu.dot_dimension_numbers<[1], [0], [0], [1], [0, 0, 1, 1], [], []>} : vector<64x64xf32>, vector<64x128xf32>, vector<64x128xf32> -> vector<64x128xf32>
    %c0_12 = arith.constant 0 : index
    %c0_13 = arith.constant 0 : index
    %19 = vector.load %arg6[%c0_12, %c0_13] : memref<1x128xf32, #tpu.memory_space<vmem>>, vector<1x128xf32>
    %20 = vector.broadcast %19 : vector<1x128xf32> to vector<64x128xf32>
    %21 = arith.addf %18, %20 : vector<64x128xf32>
    %cst_14 = arith.constant 0.000000e+00 : f32
    %22 = vector.broadcast %cst_14 : f32 to vector<64x128xf32>
    %23 = arith.maximumf %21, %22 : vector<64x128xf32>
    %24 = vector.shape_cast %11 : vector<8x128xf32> to vector<8x1x128xf32>
    %25 = vector.shape_cast %23 : vector<64x128xf32> to vector<8x8x128xf32>
    %26 = vector.broadcast %24 : vector<8x1x128xf32> to vector<8x8x128xf32>
    %27 = arith.mulf %26, %25 : vector<8x8x128xf32>
    %28 = vector.shape_cast %27 : vector<8x8x128xf32> to vector<64x128xf32>
    %c0_15 = arith.constant 0 : index
    %c0_16 = arith.constant 0 : index
    %29 = vector.load %arg7[%c0_15, %c0_16] : memref<128x128xf32, #tpu.memory_space<vmem>>, vector<128x128xf32>
    %cst_17 = arith.constant dense<0.000000e+00> : vector<64x128xf32>
    %30 = tpu.matmul %28, %29, %cst_17 {dimension_numbers = #tpu.dot_dimension_numbers<[1], [0], [0], [1], [0, 0, 1, 1], [], []>} : vector<64x128xf32>, vector<128x128xf32>, vector<64x128xf32> -> vector<64x128xf32>
    %c0_18 = arith.constant 0 : index
    %c0_19 = arith.constant 0 : index
    %31 = vector.load %arg8[%c0_18, %c0_19] : memref<1x128xf32, #tpu.memory_space<vmem>>, vector<1x128xf32>
    %32 = vector.broadcast %31 : vector<1x128xf32> to vector<64x128xf32>
    %33 = arith.addf %30, %32 : vector<64x128xf32>
    %cst_20 = arith.constant 0.000000e+00 : f32
    %34 = vector.broadcast %cst_20 : f32 to vector<64x128xf32>
    %35 = arith.maximumf %33, %34 : vector<64x128xf32>
    %c0_21 = arith.constant 0 : index
    %c0_22 = arith.constant 0 : index
    %36 = vector.load %arg9[%c0_21, %c0_22] : memref<128x128xf32, #tpu.memory_space<vmem>>, vector<128x128xf32>
    %cst_23 = arith.constant dense<0.000000e+00> : vector<64x128xf32>
    %37 = tpu.matmul %35, %36, %cst_23 {dimension_numbers = #tpu.dot_dimension_numbers<[1], [0], [0], [1], [0, 0, 1, 1], [], []>} : vector<64x128xf32>, vector<128x128xf32>, vector<64x128xf32> -> vector<64x128xf32>
    %c0_24 = arith.constant 0 : index
    %c0_25 = arith.constant 0 : index
    %38 = vector.load %arg10[%c0_24, %c0_25] : memref<1x128xf32, #tpu.memory_space<vmem>>, vector<1x128xf32>
    %39 = vector.broadcast %38 : vector<1x128xf32> to vector<64x128xf32>
    %40 = arith.addf %37, %39 : vector<64x128xf32>
    %cst_26 = arith.constant 0.000000e+00 : f32
    %41 = vector.broadcast %cst_26 : f32 to vector<64x128xf32>
    %42 = arith.maximumf %40, %41 : vector<64x128xf32>
    %c0_27 = arith.constant 0 : index
    %c0_28 = arith.constant 0 : index
    %43 = vector.load %arg11[%c0_27, %c0_28] : memref<128x4xf32, #tpu.memory_space<vmem>>, vector<128x4xf32>
    %cst_29 = arith.constant dense<0.000000e+00> : vector<64x4xf32>
    %44 = tpu.matmul %42, %43, %cst_29 {dimension_numbers = #tpu.dot_dimension_numbers<[1], [0], [0], [1], [0, 0, 1, 1], [], []>} : vector<64x128xf32>, vector<128x4xf32>, vector<64x4xf32> -> vector<64x4xf32>
    %c0_30 = arith.constant 0 : index
    %c0_31 = arith.constant 0 : index
    %45 = vector.load %arg12[%c0_30, %c0_31] : memref<1x4xf32, #tpu.memory_space<vmem>>, vector<1x4xf32>
    %46 = vector.broadcast %45 : vector<1x4xf32> to vector<64x4xf32>
    %47 = arith.addf %44, %46 : vector<64x4xf32>
    %c0_32 = arith.constant 0 : index
    %c0_33 = arith.constant 0 : index
    %48 = vector.load %arg13[%c0_32, %c0_33] : memref<64x4xf32, #tpu.memory_space<vmem>>, vector<64x4xf32>
    tpu.vector_store %arg13[%c0_32, %c0_33], %47 {strides = array<i32>} : memref<64x4xf32, #tpu.memory_space<vmem>>, vector<64x4xf32>,
    return
  }
  func.func @transform_0(%arg0: i32) -> (i32, i32) {
    %c0_i32 = arith.constant 0 : i32
    %c0_i32_0 = arith.constant 0 : i32
    return %arg0, %c0_i32 : i32, i32
  }
  func.func @transform_1(%arg0: i32) -> (i32, i32) {
    %c0_i32 = arith.constant 0 : i32
    %c0_i32_0 = arith.constant 0 : i32
    return %arg0, %c0_i32 : i32, i32
  }
  func.func @transform_2(%arg0: i32) -> (i32, i32) {
    %c0_i32 = arith.constant 0 : i32
    %c0_i32_0 = arith.constant 0 : i32
    %c0_i32_1 = arith.constant 0 : i32
    return %c0_i32, %c0_i32_0 : i32, i32
  }
  func.func @transform_3(%arg0: i32) -> (i32, i32) {
    %c0_i32 = arith.constant 0 : i32
    %c0_i32_0 = arith.constant 0 : i32
    %c0_i32_1 = arith.constant 0 : i32
    return %c0_i32, %c0_i32_0 : i32, i32
  }
  func.func @transform_4(%arg0: i32) -> (i32, i32) {
    %c0_i32 = arith.constant 0 : i32
    %c0_i32_0 = arith.constant 0 : i32
    %c0_i32_1 = arith.constant 0 : i32
    return %c0_i32, %c0_i32_0 : i32, i32
  }
  func.func @transform_5(%arg0: i32) -> (i32, i32) {
    %c0_i32 = arith.constant 0 : i32
    %c0_i32_0 = arith.constant 0 : i32
    %c0_i32_1 = arith.constant 0 : i32
    return %c0_i32, %c0_i32_0 : i32, i32
  }
  func.func @transform_6(%arg0: i32) -> (i32, i32) {
    %c0_i32 = arith.constant 0 : i32
    %c0_i32_0 = arith.constant 0 : i32
    %c0_i32_1 = arith.constant 0 : i32
    return %c0_i32, %c0_i32_0 : i32, i32
  }
  func.func @transform_7(%arg0: i32) -> (i32, i32) {
    %c0_i32 = arith.constant 0 : i32
    %c0_i32_0 = arith.constant 0 : i32
    %c0_i32_1 = arith.constant 0 : i32
    return %c0_i32, %c0_i32_0 : i32, i32
  }
  func.func @transform_8(%arg0: i32) -> (i32, i32) {
    %c0_i32 = arith.constant 0 : i32
    %c0_i32_0 = arith.constant 0 : i32
    %c0_i32_1 = arith.constant 0 : i32
    return %c0_i32, %c0_i32_0 : i32, i32
  }
  func.func @transform_9(%arg0: i32) -> (i32, i32) {
    %c0_i32 = arith.constant 0 : i32
    %c0_i32_0 = arith.constant 0 : i32
    %c0_i32_1 = arith.constant 0 : i32
    return %c0_i32, %c0_i32_0 : i32, i32
  }
  func.func @transform_10(%arg0: i32) -> (i32, i32) {
    %c0_i32 = arith.constant 0 : i32
    %c0_i32_0 = arith.constant 0 : i32
    %c0_i32_1 = arith.constant 0 : i32
    return %c0_i32, %c0_i32_0 : i32, i32
  }
  func.func @transform_11(%arg0: i32) -> (i32, i32) {
    %c0_i32 = arith.constant 0 : i32
    %c0_i32_0 = arith.constant 0 : i32
    %c0_i32_1 = arith.constant 0 : i32
    return %c0_i32, %c0_i32_0 : i32, i32
  }
  func.func @transform_12(%arg0: i32) -> (i32, i32) {
    %c0_i32 = arith.constant 0 : i32
    %c0_i32_0 = arith.constant 0 : i32
    return %arg0, %c0_i32 : i32, i32
  }
}

</mosaic_0001>

<llo_original>
// kernel: tpu_custom_call.1
$region0: #{tpu_custom_call.1}
  #allocation0 [shape = 'u32[]', space=smem, size = 0x4, offset = 0x4, fixed_abs, tag = 'smem constant byte address 0x4 - core index']
  #allocation1 [shape = 'u32[72,128]{1,0:T(1,128)}', space=vmem, size = 0x9000, scoped, tag = 'internal scratch']
  %s0 = inlined_call_operand.hbm [shape: f32[8,16], index: 0, kind: input, shape index: {}]
  %s1 = inlined_call_operand.vmem [shape: f32[64,1], index: 1, kind: input, shape index: {}]
  %s2 = inlined_call_operand.hbm [shape: f32[16,128], index: 2, kind: input, shape index: {}]
  %s3 = inlined_call_operand.vmem [shape: f32[1,128], index: 3, kind: input, shape index: {}]
  %s4 = inlined_call_operand.vmem [shape: f32[64,128], index: 4, kind: input, shape index: {}]
  %s5 = inlined_call_operand.vmem [shape: f32[1,128], index: 5, kind: input, shape index: {}]
  %s6 = inlined_call_operand.vmem [shape: f32[128,128], index: 6, kind: input, shape index: {}]
  %s7 = inlined_call_operand.vmem [shape: f32[1,128], index: 7, kind: input, shape index: {}]
  %s8 = inlined_call_operand.hbm [shape: f32[128,128], index: 8, kind: input, shape index: {}]
  %s9 = inlined_call_operand.vmem [shape: f32[1,128], index: 9, kind: input, shape index: {}]
  %s10 = inlined_call_operand.vmem [shape: f32[128,4], index: 10, kind: input, shape index: {}]
  %s11 = inlined_call_operand.vmem [shape: f32[1,4], index: 11, kind: input, shape index: {}]
  %s12 = inlined_call_operand.vmem [shape: f32[64,4], index: 12, kind: output, shape index: {}]
  %s13 = sld [smem:[#allocation0]]
  $region70: #{tpu_custom_call.1} parent=0
    _
  %s15 = ssub.s32 1, %s13
  %s16 = scalar_select 0, %s15, %s13
  $region1: #{tpu_custom_call.1} parent=0
    #allocation2 [shape = 'u8[4096]{0}', space=vmem, size = 0x1000, scoped, tag = 'input window, operand 0, single buffered']
    #allocation3 [shape = 's32[1]{0}', space=sflag, size = 0x4, scoped, tag = 'scoped memory for tpu_custom_call.1']
    #allocation4 [shape = 'u8[8192]{0}', space=vmem, size = 0x2000, scoped, tag = 'input window, operand 2, single buffered']
    #allocation5 [shape = 's32[1]{0}', space=sflag, size = 0x4, scoped, tag = 'scoped memory for tpu_custom_call.1']
    #allocation6 [shape = 'u8[65536]{0}', space=vmem, size = 0x10000, scoped, tag = 'input window, operand 8, single buffered']
    %17 = vsyncpa [#allocation3], 0
    %18 = vsyncpa [#allocation5], 0
    // Predicated region
    $region2: #{tpu_custom_call.1} parent=1 // pred_check
      _
    $region3: #{tpu_custom_call.1} parent=1 // pred_check_branch
      %20 = sbr.rel (0) target = $region5
    $region4: #{tpu_custom_call.1} parent=1 // pred_region
      %22 = vsyncadd [#allocation3], 0
      %s24 = sshll.u32 %s0, 4
      %s25 = int_to_ptr.hbm [resolvable:$true] %s24
      %s26 = sshll.u32 [#allocation2], 4
      %s27 = int_to_ptr.vmem [resolvable:$true] %s26
      %29 = dma.hbm_to_vmem [thread:$0]  %s25, 128, %s27, [#allocation3]
    $region5: #{tpu_custom_call.1} parent=1 // pred_fallthru
      _
    // Predicated region
    $region6: #{tpu_custom_call.1} parent=1 // pred_check
      _
    $region7: #{tpu_custom_call.1} parent=1 // pred_check_branch
      %31 = sbr.rel (0) target = $region9
    $region8: #{tpu_custom_call.1} parent=1 // pred_region
      _
    $region9: #{tpu_custom_call.1} parent=1 // pred_fallthru
      _
    // Predicated region
    $region10: #{tpu_custom_call.1} parent=1 // pred_check
      _
    $region11: #{tpu_custom_call.1} parent=1 // pred_check_branch
      %33 = sbr.rel (0) target = $region13
    $region12: #{tpu_custom_call.1} parent=1 // pred_region
      %35 = vsyncadd [#allocation5], 0
      %s36 = sshll.u32 %s2, 4
      %s37 = int_to_ptr.hbm [resolvable:$true] %s36
      %s38 = sshll.u32 [#allocation4], 4
      %s39 = int_to_ptr.vmem [resolvable:$true] %s38
      %44 = dma.hbm_to_vmem [thread:$0]  %s37, 256, %s39, [#allocation5], 128, 128, 8
    $region13: #{tpu_custom_call.1} parent=1 // pred_fallthru
      _
    // Predicated region
    $region14: #{tpu_custom_call.1} parent=1 // pred_check
      _
    $region15: #{tpu_custom_call.1} parent=1 // pred_check_branch
      %46 = sbr.rel (0) target = $region17
    $region16: #{tpu_custom_call.1} parent=1 // pred_region
      _
    $region17: #{tpu_custom_call.1} parent=1 // pred_fallthru
      _
    // Predicated region
    $region18: #{tpu_custom_call.1} parent=1 // pred_check
      _
    $region19: #{tpu_custom_call.1} parent=1 // pred_check_branch
      %48 = sbr.rel (0) target = $region21
    $region20: #{tpu_custom_call.1} parent=1 // pred_region
      _
    $region21: #{tpu_custom_call.1} parent=1 // pred_fallthru
      _
    // Predicated region
    $region22: #{tpu_custom_call.1} parent=1 // pred_check
      _
    $region23: #{tpu_custom_call.1} parent=1 // pred_check_branch
      %50 = sbr.rel (0) target = $region25
    $region24: #{tpu_custom_call.1} parent=1 // pred_region
      _
    $region25: #{tpu_custom_call.1} parent=1 // pred_fallthru
      _
    // Predicated region
    $region26: #{tpu_custom_call.1} parent=1 // pred_check
      _
    $region27: #{tpu_custom_call.1} parent=1 // pred_check_branch
      %52 = sbr.rel (0) target = $region29
    $region28: #{tpu_custom_call.1} parent=1 // pred_region
      _
    $region29: #{tpu_custom_call.1} parent=1 // pred_fallthru
      _
    // Predicated region
    $region30: #{tpu_custom_call.1} parent=1 // pred_check
      _
    $region31: #{tpu_custom_call.1} parent=1 // pred_check_branch
      %54 = sbr.rel (0) target = $region33
    $region32: #{tpu_custom_call.1} parent=1 // pred_region
      _
    $region33: #{tpu_custom_call.1} parent=1 // pred_fallthru
      _
    // Predicated region
    $region34: #{tpu_custom_call.1} parent=1 // pred_check
      _
    $region35: #{tpu_custom_call.1} parent=1 // pred_check_branch
      %56 = sbr.rel (0) target = $region37
    $region36: #{tpu_custom_call.1} parent=1 // pred_region
      %58 = vsyncadd [#allocation5], 0
      %s59 = sshll.u32 %s8, 4
      %s60 = int_to_ptr.hbm [resolvable:$true] %s59
      %s61 = sshll.u32 [#allocation6], 4
      %s62 = int_to_ptr.vmem [resolvable:$true] %s61
      %67 = dma.hbm_to_vmem [thread:$0]  %s60, 2048, %s62, [#allocation5], 128, 128, 8
    $region37: #{tpu_custom_call.1} parent=1 // pred_fallthru
      _
    // Predicated region
    $region38: #{tpu_custom_call.1} parent=1 // pred_check
      _
    $region39: #{tpu_custom_call.1} parent=1 // pred_check_branch
      %69 = sbr.rel (0) target = $region41
    $region40: #{tpu_custom_call.1} parent=1 // pred_region
      _
    $region41: #{tpu_custom_call.1} parent=1 // pred_fallthru
      _
    // Predicated region
    $region42: #{tpu_custom_call.1} parent=1 // pred_check
      _
    $region43: #{tpu_custom_call.1} parent=1 // pred_check_branch
      %71 = sbr.rel (0) target = $region45
    $region44: #{tpu_custom_call.1} parent=1 // pred_region
      _
    $region45: #{tpu_custom_call.1} parent=1 // pred_fallthru
      _
    // Predicated region
    $region46: #{tpu_custom_call.1} parent=1 // pred_check
      _
    $region47: #{tpu_custom_call.1} parent=1 // pred_check_branch
      %73 = sbr.rel (0) target = $region49
    $region48: #{tpu_custom_call.1} parent=1 // pred_region
      _
    $region49: #{tpu_custom_call.1} parent=1 // pred_fallthru
      _
    // Predicated region
    $region50: #{tpu_custom_call.1} parent=1 // pred_check
      _
    $region51: #{tpu_custom_call.1} parent=1 // pred_check_branch
      %75 = sbr.rel (0) target = $region53
    $region52: #{tpu_custom_call.1} parent=1 // pred_region
      %77 = dma.done [#allocation3], 128
    $region53: #{tpu_custom_call.1} parent=1 // pred_fallthru
      _
    // Predicated region
    $region54: #{tpu_custom_call.1} parent=1 // pred_check
      _
    $region55: #{tpu_custom_call.1} parent=1 // pred_check_branch
      %79 = sbr.rel (0) target = $region57
    $region56: #{tpu_custom_call.1} parent=1 // pred_region
      %81 = dma.done [#allocation5], 256
    $region57: #{tpu_custom_call.1} parent=1 // pred_fallthru
      _
    // Predicated region
    $region58: #{tpu_custom_call.1} parent=1 // pred_check
      _
    $region59: #{tpu_custom_call.1} parent=1 // pred_check_branch
      %83 = sbr.rel (0) target = $region61
    $region60: #{tpu_custom_call.1} parent=1 // pred_region
      %85 = dma.done [#allocation5], 2048
    $region61: #{tpu_custom_call.1} parent=1 // pred_fallthru
      _
    %v86 = vlaneseq
    %v87 = vand.u32 %v86, 127
    %v88 = vcvt.s32.f32 %v87
    %v89 = vmul.f32 %v88, 3.1415927
    %v90 = vld [vmem:[#allocation2] sm:$0xff]
    %v91 = vld [vmem:[#allocation4] sm:$0xff]
    %v92 = vld [vmem:[#allocation4 + $0x8] sm:$0xff]
    %v93 = vld [vmem:[%s3] sm:$0x1]
    %v95 = vperm.slane %v93, 0
    %vm97 = vcmask 130048
    %v99 = vsel %vm97, %v90, 0
    %101 = vmatpush.msra.mxu0 0.0
    %102 = vmatpush.msra.mxu0 0.0
    %103 = vmatpush.msra.mxu0 0.0
    %104 = vmatpush.msra.mxu0 0.0
    %105 = vmatpush.msra.mxu0 0.0
    %106 = vmatpush.msra.mxu0 0.0
    %107 = vmatpush.msra.mxu0 0.0
    %108 = vmatpush.msra.mxu0 0.0
    %109 = vmatpush.msra.mxu0 0.0
    %110 = vmatpush.msra.mxu0 0.0
    %111 = vmatpush.msra.mxu0 0.0
    %112 = vmatpush.msra.mxu0 0.0
    %113 = vmatpush.msra.mxu0 0.0
    %114 = vmatpush.msra.mxu0 0.0
    %115 = vmatpush.msra.mxu0 %v92
    %116 = vmatpush.msra.mxu0 %v91
    %117 = vmatmul.f32.gmra.mxu0 %v99
    %v118 = vpop.f32.mrf.mxu0
    %v119 = vadd.f32 %v95, %v118
    %120 = vdwg.mxu0
    %v121 = vmax.f32 %v119, 0.0
    %v122 = vld [vmem:[%s1] sm:$0xff]
    %v123 = vld [vmem:[%s1 + $0x8] sm:$0xff]
    %v124 = vld [vmem:[%s1 + $0x10] sm:$0xff]
    %v125 = vld [vmem:[%s1 + $0x18] sm:$0xff]
    %v126 = vld [vmem:[%s1 + $0x20] sm:$0xff]
    %v127 = vld [vmem:[%s1 + $0x28] sm:$0xff]
    %v128 = vld [vmem:[%s1 + $0x30] sm:$0xff]
    %v129 = vld [vmem:[%s1 + $0x38] sm:$0xff]
    %131 = vset.pattern.permute.xlu0 0
    %132 = vperm.xlu0 %131, %v122
    %v133 = vpop.permute.xlu0 %132
    %136 = vset.pattern.permute.xlu0 0
    %137 = vperm.xlu0 %136, %v123
    %v138 = vpop.permute.xlu0 %137
    %141 = vset.pattern.permute.xlu0 0
    %142 = vperm.xlu0 %141, %v124
    %v143 = vpop.permute.xlu0 %142
    %146 = vset.pattern.permute.xlu0 0
    %147 = vperm.xlu0 %146, %v125
    %v148 = vpop.permute.xlu0 %147
    %151 = vset.pattern.permute.xlu0 0
    %152 = vperm.xlu0 %151, %v126
    %v153 = vpop.permute.xlu0 %152
    %156 = vset.pattern.permute.xlu0 0
    %157 = vperm.xlu0 %156, %v127
    %v158 = vpop.permute.xlu0 %157
    %161 = vset.pattern.permute.xlu0 0
    %162 = vperm.xlu0 %161, %v128
    %v163 = vpop.permute.xlu0 %162
    %166 = vset.pattern.permute.xlu0 0
    %167 = vperm.xlu0 %166, %v129
    %v168 = vpop.permute.xlu0 %167
    %v170 = vmul.f32 %v133, %v89
    %v171 = vmul.f32 %v138, %v89
    %v172 = vmul.f32 %v143, %v89
    %v173 = vmul.f32 %v148, %v89
    %v174 = vmul.f32 %v153, %v89
    %v175 = vmul.f32 %v158, %v89
    %v176 = vmul.f32 %v163, %v89
    %v177 = vmul.f32 %v168, %v89
    %v178 = vand.u32 2147483647, %v170
    %vm179 = vcmp.le.f32.partialorder %v178, 0.7853982
    %vm180 = vcmp.lt.s32.totalorder %v170, 0
    %v181 = vand.u32 %v170, 2139095040
    %v182 = vshrl.u32 %v181, 23
    %v183 = vsub.s32 %v182, 127
    %v184 = vand.u32 2147483647, %v170
    %v185 = vand.u32 %v184, 8388607
    %v186 = vor.u32 %v185, 8388608
    %v187 = vsub.s32 0, %v186
    %v188 = vadd.s32 %v183, 1
    %vm189 = vcmp.gt.s32.totalorder %v188, 0
    %v190 = vsel %vm189, %v188, 0
    %v191 = vshrl.u32 %v190, 5
    %v192 = vand.u32 %v190, 31
    %v193 = vsub.s32 32, %v192
    %v194 = vshrl.u32 683565275, %v193
    %v195 = vshll.u32 683565275, %v192
    %v196 = vshrl.u32 2475754826, %v193
    %v197 = vor.u32 %v195, %v196
    %v198 = vshll.u32 2475754826, %v192
    %v199 = vshrl.u32 2131351028, %v193
    %v200 = vor.u32 %v198, %v199
    %v201 = vshll.u32 2131351028, %v192
    %v202 = vshrl.u32 2102212464, %v193
    %v203 = vor.u32 %v201, %v202
    %v204 = vshll.u32 2102212464, %v192
    %v205 = vshrl.u32 920167782, %v193
    %v206 = vor.u32 %v204, %v205
    %v207 = vshll.u32 920167782, %v192
    %v208 = vshrl.u32 1326507024, %v193
    %v209 = vor.u32 %v207, %v208
    %vm210 = vcmp.lt.s32.totalorder %v191, 1
    %vm211 = vcmp.lt.s32.totalorder %v191, 2
    %vm212 = vcmp.lt.s32.totalorder %v191, 3
    %vm213 = vcmp.lt.s32.totalorder %v191, 4
    %v214 = vsel %vm210, %v194, %v197
    %v215 = vsel %vm213, %v203, 2102212464
    %v216 = vsel %vm212, %v200, %v215
    %v217 = vsel %vm211, %v214, %v216
    %v218 = vsel %vm210, %v197, %v200
    %v219 = vsel %vm213, %v206, 920167782
    %v220 = vsel %vm212, %v203, %v219
    %v221 = vsel %vm211, %v218, %v220
    %v222 = vsel %vm210, %v200, %v203
    %v223 = vsel %vm213, %v209, 1326507024
    %v224 = vsel %vm212, %v206, %v223
    %v225 = vsel %vm211, %v222, %v224
    %v226 = vshll.u32 %v186, 8
    %v227 = vand.u32 %v226, 65535
    %v228 = vshrl.u32 %v226, 16
    %v229 = vand.u32 %v225, 65535
    %v230 = vshrl.u32 %v225, 16
    %v231 = vmul.u32 %v227, %v229
    %v232 = vmul.u32 %v227, %v230
    %v233 = vmul.u32 %v228, %v229
    %v234 = vmul.u32 %v228, %v230
    %v235 = vshll.u32 %v232, 16
    %v236 = vshrl.u32 %v232, 16
    %v237 = vshll.u32 %v233, 16
    %v238 = vshrl.u32 %v233, 16
    %vm239 = vc.u32 %v231, %v235
    %v240 = vsel %vm239, 1, 0
    %v241 = vadd.s32 %v231, %v235
    %v242 = vadd.s32 %v234, %v240
    %vm243 = vc.u32 %v241, %v237
    %v244 = vsel %vm243, 1, 0
    %v245 = vadd.s32 %v241, %v237
    %v246 = vadd.s32 %v242, %v244
    %v247 = vadd.s32 %v246, %v236
    %v248 = vadd.s32 %v247, %v238
    %v249 = vand.u32 %v226, 65535
    %v250 = vshrl.u32 %v226, 16
    %v251 = vand.u32 %v221, 65535
    %v252 = vshrl.u32 %v221, 16
    %v253 = vmul.u32 %v249, %v251
    %v254 = vmul.u32 %v249, %v252
    %v255 = vmul.u32 %v250, %v251
    %v256 = vmul.u32 %v250, %v252
    %v257 = vshll.u32 %v254, 16
    %v258 = vshrl.u32 %v254, 16
    %v259 = vshll.u32 %v255, 16
    %v260 = vshrl.u32 %v255, 16
    %vm261 = vc.u32 %v253, %v257
    %v262 = vsel %vm261, 1, 0
    %v263 = vadd.s32 %v253, %v257
    %v264 = vadd.s32 %v256, %v262
    %vm265 = vc.u32 %v263, %v259
    %v266 = vsel %vm265, 1, 0
    %v267 = vadd.s32 %v263, %v259
    %v268 = vadd.s32 %v264, %v266
    %v269 = vadd.s32 %v268, %v258
    %v270 = vadd.s32 %v269, %v260
    %v271 = vmul.u32 %v226, %v217
    %v272 = vadd.s32 %v248, %v267
    %vm273 = vc.u32 %v248, %v267
    %v274 = vadd.s32 %v270, 1
    %v275 = vsel %vm273, %v274, %v270
    %v276 = vadd.s32 %v271, %v275
    %v277 = vadd.s32 %v276, 536870912
    %v278 = vshrl.u32 %v277, 30
    %v279 = vshll.u32 %v278, 30
    %v280 = vsub.s32 %v276, %v279
    %vm281 = vcmp.lt.s32.totalorder %v280, 0
    %v282 = vsub.s32 0, %v280
    %v283 = vsel %vm281, %v282, %v280
    %v284 = vclz %v283
    %v285 = vsub.s32 %v284, 2
    %vm286 = vcmp.gt.s32.totalorder 0, %v285
    %v287 = vsel %vm286, 0, %v285
    %v288 = vsub.s32 32, %v287
    %v289 = vshll.u32 %v280, %v287
    %v290 = vshrl.u32 %v272, %v288
    %v291 = vor.u32 %v289, %v290
    %v292 = vsub.s32 4294967266, %v287
    %v293 = vadd.s32 %v292, 127
    %v294 = vshll.u32 %v293, 23
    %v295 = vor.u32 4788187, %v294
    %v296 = vand.u32 2147483647, %v295
    %v298 = vcvt.s32.f32 %v291
    %v299 = vmul.f32 %v298, %v296
    %v300 = vxor.u32 %v299, 2147483648
    %v301 = vsel %vm180, %v300, %v299
    %v302 = vsub.s32 4, %v278
    %v303 = vsel %vm180, %v302, %v278
    %v304 = vsel %vm179, %v170, %v301
    %v305 = vsel %vm179, 0, %v303
    %v306 = vmul.f32 %v304, %v304
    %v307 = vmul.f32 %v306, -0.001358992
    %v308 = vadd.f32 %v307, 0.041655596
    %v309 = vmul.f32 %v306, %v308
    %v310 = vadd.f32 %v309, -0.4999988
    %v311 = vmul.f32 %v306, %v310
    %v312 = vadd.f32 1.0, %v311
    %v313 = vmul.f32 %v304, %v304
    %v314 = vmul.f32 %v313, -0.00019511016
    %v315 = vadd.f32 %v314, 0.008332121
    %v316 = vmul.f32 %v313, %v315
    %v317 = vadd.f32 %v316, -0.16666654
    %v318 = vmul.f32 %v313, %v317
    %v319 = vadd.f32 %v318, 1.0
    %v320 = vmul.f32 %v319, %v304
    %vm321 = vweird.f32 %v170
    %v322 = vand.u32 %v305, 3
    %vm323 = vcmp.lt.s32.totalorder %v322, 2
    %vm324 = vcmp.eq.s32.totalorder %v322, 0
    %v325 = vxor.u32 %v320, 2147483648
    %v326 = vsel %vm324, %v312, %v325
    %vm327 = vcmp.eq.s32.totalorder %v322, 2
    %v328 = vxor.u32 %v312, 2147483648
    %v329 = vsel %vm327, %v328, %v320
    %v330 = vsel %vm323, %v326, %v329
    %v331 = vsel %vm321, nan, %v330
    %v332 = vand.u32 2147483647, %v171
    %vm333 = vcmp.le.f32.partialorder %v332, 0.7853982
    %vm334 = vcmp.lt.s32.totalorder %v171, 0
    %v335 = vand.u32 %v171, 2139095040
    %v336 = vshrl.u32 %v335, 23
    %v337 = vsub.s32 %v336, 127
    %v338 = vand.u32 2147483647, %v171
    %v339 = vand.u32 %v338, 8388607
    %v340 = vor.u32 %v339, 8388608
    %v341 = vsub.s32 0, %v340
    %v342 = vadd.s32 %v337, 1
    %vm343 = vcmp.gt.s32.totalorder %v342, 0
    %v344 = vsel %vm343, %v342, 0
    %v345 = vshrl.u32 %v344, 5
    %v346 = vand.u32 %v344, 31
    %v347 = vsub.s32 32, %v346
    %v348 = vshrl.u32 683565275, %v347
    %v349 = vshll.u32 683565275, %v346
    %v350 = vshrl.u32 2475754826, %v347
    %v351 = vor.u32 %v349, %v350
    %v352 = vshll.u32 2475754826, %v346
    %v353 = vshrl.u32 2131351028, %v347
    %v354 = vor.u32 %v352, %v353
    %v355 = vshll.u32 2131351028, %v346
    %v356 = vshrl.u32 2102212464, %v347
    %v357 = vor.u32 %v355, %v356
    %v358 = vshll.u32 2102212464, %v346
    %v359 = vshrl.u32 920167782, %v347
    %v360 = vor.u32 %v358, %v359
    %v361 = vshll.u32 920167782, %v346
    %v362 = vshrl.u32 1326507024, %v347
    %v363 = vor.u32 %v361, %v362
    %vm364 = vcmp.lt.s32.totalorder %v345, 1
    %vm365 = vcmp.lt.s32.totalorder %v345, 2
    %vm366 = vcmp.lt.s32.totalorder %v345, 3
    %vm367 = vcmp.lt.s32.totalorder %v345, 4
    %v368 = vsel %vm364, %v348, %v351
    %v369 = vsel %vm367, %v357, 2102212464
    %v370 = vsel %vm366, %v354, %v369
    %v371 = vsel %vm365, %v368, %v370
    %v372 = vsel %vm364, %v351, %v354
    %v373 = vsel %vm367, %v360, 920167782
    %v374 = vsel %vm366, %v357, %v373
    %v375 = vsel %vm365, %v372, %v374
    %v376 = vsel %vm364, %v354, %v357
    %v377 = vsel %vm367, %v363, 1326507024
    %v378 = vsel %vm366, %v360, %v377
    %v379 = vsel %vm365, %v376, %v378
    %v380 = vshll.u32 %v340, 8
    %v381 = vand.u32 %v380, 65535
    %v382 = vshrl.u32 %v380, 16
    %v383 = vand.u32 %v379, 65535
    %v384 = vshrl.u32 %v379, 16
    %v385 = vmul.u32 %v381, %v383
    %v386 = vmul.u32 %v381, %v384
    %v387 = vmul.u32 %v382, %v383
    %v388 = vmul.u32 %v382, %v384
    %v389 = vshll.u32 %v386, 16
    %v390 = vshrl.u32 %v386, 16
    %v391 = vshll.u32 %v387, 16
    %v392 = vshrl.u32 %v387, 16
    %vm393 = vc.u32 %v385, %v389
    %v394 = vsel %vm393, 1, 0
    %v395 = vadd.s32 %v385, %v389
    %v396 = vadd.s32 %v388, %v394
    %vm397 = vc.u32 %v395, %v391
    %v398 = vsel %vm397, 1, 0
    %v399 = vadd.s32 %v395, %v391
    %v400 = vadd.s32 %v396, %v398
    %v401 = vadd.s32 %v400, %v390
    %v402 = vadd.s32 %v401, %v392
    %v403 = vand.u32 %v380, 65535
    %v404 = vshrl.u32 %v380, 16
    %v405 = vand.u32 %v375, 65535
    %v406 = vshrl.u32 %v375, 16
    %v407 = vmul.u32 %v403, %v405
    %v408 = vmul.u32 %v403, %v406
    %v409 = vmul.u32 %v404, %v405
    %v410 = vmul.u32 %v404, %v406
    %v411 = vshll.u32 %v408, 16
    %v412 = vshrl.u32 %v408, 16
    %v413 = vshll.u32 %v409, 16
    %v414 = vshrl.u32 %v409, 16
    %vm415 = vc.u32 %v407, %v411
    %v416 = vsel %vm415, 1, 0
    %v417 = vadd.s32 %v407, %v411
    %v418 = vadd.s32 %v410, %v416
    %vm419 = vc.u32 %v417, %v413
    %v420 = vsel %vm419, 1, 0
    %v421 = vadd.s32 %v417, %v413
    %v422 = vadd.s32 %v418, %v420
    %v423 = vadd.s32 %v422, %v412
    %v424 = vadd.s32 %v423, %v414
    %v425 = vmul.u32 %v380, %v371
    %v426 = vadd.s32 %v402, %v421
    %vm427 = vc.u32 %v402, %v421
    %v428 = vadd.s32 %v424, 1
    %v429 = vsel %vm427, %v428, %v424
    %v430 = vadd.s32 %v425, %v429
    %v431 = vadd.s32 %v430, 536870912
    %v432 = vshrl.u32 %v431, 30
    %v433 = vshll.u32 %v432, 30
    %v434 = vsub.s32 %v430, %v433
    %vm435 = vcmp.lt.s32.totalorder %v434, 0
    %v436 = vsub.s32 0, %v434
    %v437 = vsel %vm435, %v436, %v434
    %v438 = vclz %v437
    %v439 = vsub.s32 %v438, 2
    %vm440 = vcmp.gt.s32.totalorder 0, %v439
    %v441 = vsel %vm440, 0, %v439
    %v442 = vsub.s32 32, %v441
    %v443 = vshll.u32 %v434, %v441
    %v444 = vshrl.u32 %v426, %v442
    %v445 = vor.u32 %v443, %v444
    %v446 = vsub.s32 4294967266, %v441
    %v447 = vadd.s32 %v446, 127
    %v448 = vshll.u32 %v447, 23
    %v449 = vor.u32 4788187, %v448
    %v450 = vand.u32 2147483647, %v449
    %v452 = vcvt.s32.f32 %v445
    %v453 = vmul.f32 %v452, %v450
    %v454 = vxor.u32 %v453, 2147483648
    %v455 = vsel %vm334, %v454, %v453
    %v456 = vsub.s32 4, %v432
    %v457 = vsel %vm334, %v456, %v432
    %v458 = vsel %vm333, %v171, %v455
    %v459 = vsel %vm333, 0, %v457
    %v460 = vmul.f32 %v458, %v458
    %v461 = vmul.f32 %v460, -0.001358992
    %v462 = vadd.f32 %v461, 0.041655596
    %v463 = vmul.f32 %v460, %v462
    %v464 = vadd.f32 %v463, -0.4999988
    %v465 = vmul.f32 %v460, %v464
    %v466 = vadd.f32 1.0, %v465
    %v467 = vmul.f32 %v458, %v458
    %v468 = vmul.f32 %v467, -0.00019511016
    %v469 = vadd.f32 %v468, 0.008332121
    %v470 = vmul.f32 %v467, %v469
    %v471 = vadd.f32 %v470, -0.16666654
    %v472 = vmul.f32 %v467, %v471
    %v473 = vadd.f32 %v472, 1.0
    %v474 = vmul.f32 %v473, %v458
    %vm475 = vweird.f32 %v171
    %v476 = vand.u32 %v459, 3
    %vm477 = vcmp.lt.s32.totalorder %v476, 2
    %vm478 = vcmp.eq.s32.totalorder %v476, 0
    %v479 = vxor.u32 %v474, 2147483648
    %v480 = vsel %vm478, %v466, %v479
    %vm481 = vcmp.eq.s32.totalorder %v476, 2
    %v482 = vxor.u32 %v466, 2147483648
    %v483 = vsel %vm481, %v482, %v474
    %v484 = vsel %vm477, %v480, %v483
    %v485 = vsel %vm475, nan, %v484
    %v486 = vand.u32 2147483647, %v172
    %vm487 = vcmp.le.f32.partialorder %v486, 0.7853982
    %vm488 = vcmp.lt.s32.totalorder %v172, 0
    %v489 = vand.u32 %v172, 2139095040
    %v490 = vshrl.u32 %v489, 23
    %v491 = vsub.s32 %v490, 127
    %v492 = vand.u32 2147483647, %v172
    %v493 = vand.u32 %v492, 8388607
    %v494 = vor.u32 %v493, 8388608
    %v495 = vsub.s32 0, %v494
    %v496 = vadd.s32 %v491, 1
    %vm497 = vcmp.gt.s32.totalorder %v496, 0
    %v498 = vsel %vm497, %v496, 0
    %v499 = vshrl.u32 %v498, 5
    %v500 = vand.u32 %v498, 31
    %v501 = vsub.s32 32, %v500
    %v502 = vshrl.u32 683565275, %v501
    %v503 = vshll.u32 683565275, %v500
    %v504 = vshrl.u32 2475754826, %v501
    %v505 = vor.u32 %v503, %v504
    %v506 = vshll.u32 2475754826, %v500
    %v507 = vshrl.u32 2131351028, %v501
    %v508 = vor.u32 %v506, %v507
    %v509 = vshll.u32 2131351028, %v500
    %v510 = vshrl.u32 2102212464, %v501
    %v511 = vor.u32 %v509, %v510
    %v512 = vshll.u32 2102212464, %v500
    %v513 = vshrl.u32 920167782, %v501
    %v514 = vor.u32 %v512, %v513
    %v515 = vshll.u32 920167782, %v500
    %v516 = vshrl.u32 1326507024, %v501
    %v517 = vor.u32 %v515, %v516
    %vm518 = vcmp.lt.s32.totalorder %v499, 1
    %vm519 = vcmp.lt.s32.totalorder %v499, 2
    %vm520 = vcmp.lt.s32.totalorder %v499, 3
    %vm521 = vcmp.lt.s32.totalorder %v499, 4
    %v522 = vsel %vm518, %v502, %v505
    %v523 = vsel %vm521, %v511, 2102212464
    %v524 = vsel %vm520, %v508, %v523
    %v525 = vsel %vm519, %v522, %v524
    %v526 = vsel %vm518, %v505, %v508
    %v527 = vsel %vm521, %v514, 920167782
    %v528 = vsel %vm520, %v511, %v527
    %v529 = vsel %vm519, %v526, %v528
    %v530 = vsel %vm518, %v508, %v511
    %v531 = vsel %vm521, %v517, 1326507024
    %v532 = vsel %vm520, %v514, %v531
    %v533 = vsel %vm519, %v530, %v532
    %v534 = vshll.u32 %v494, 8
    %v535 = vand.u32 %v534, 65535
    %v536 = vshrl.u32 %v534, 16
    %v537 = vand.u32 %v533, 65535
    %v538 = vshrl.u32 %v533, 16
    %v539 = vmul.u32 %v535, %v537
    %v540 = vmul.u32 %v535, %v538
    %v541 = vmul.u32 %v536, %v537
    %v542 = vmul.u32 %v536, %v538
    %v543 = vshll.u32 %v540, 16
    %v544 = vshrl.u32 %v540, 16
    %v545 = vshll.u32 %v541, 16
    %v546 = vshrl.u32 %v541, 16
    %vm547 = vc.u32 %v539, %v543
    %v548 = vsel %vm547, 1, 0
    %v549 = vadd.s32 %v539, %v543
    %v550 = vadd.s32 %v542, %v548
    %vm551 = vc.u32 %v549, %v545
    %v552 = vsel %vm551, 1, 0
    %v553 = vadd.s32 %v549, %v545
    %v554 = vadd.s32 %v550, %v552
    %v555 = vadd.s32 %v554, %v544
    %v556 = vadd.s32 %v555, %v546
    %v557 = vand.u32 %v534, 65535
    %v558 = vshrl.u32 %v534, 16
    %v559 = vand.u32 %v529, 65535
    %v560 = vshrl.u32 %v529, 16
    %v561 = vmul.u32 %v557, %v559
    %v562 = vmul.u32 %v557, %v560
    %v563 = vmul.u32 %v558, %v559
    %v564 = vmul.u32 %v558, %v560
    %v565 = vshll.u32 %v562, 16
    %v566 = vshrl.u32 %v562, 16
    %v567 = vshll.u32 %v563, 16
    %v568 = vshrl.u32 %v563, 16
    %vm569 = vc.u32 %v561, %v565
    %v570 = vsel %vm569, 1, 0
    %v571 = vadd.s32 %v561, %v565
    %v572 = vadd.s32 %v564, %v570
    %vm573 = vc.u32 %v571, %v567
    %v574 = vsel %vm573, 1, 0
    %v575 = vadd.s32 %v571, %v567
    %v576 = vadd.s32 %v572, %v574
    %v577 = vadd.s32 %v576, %v566
    %v578 = vadd.s32 %v577, %v568
    %v579 = vmul.u32 %v534, %v525
    %v580 = vadd.s32 %v556, %v575
    %vm581 = vc.u32 %v556, %v575
    %v582 = vadd.s32 %v578, 1
    %v583 = vsel %vm581, %v582, %v578
    %v584 = vadd.s32 %v579, %v583
    %v585 = vadd.s32 %v584, 536870912
    %v586 = vshrl.u32 %v585, 30
    %v587 = vshll.u32 %v586, 30
    %v588 = vsub.s32 %v584, %v587
    %vm589 = vcmp.lt.s32.totalorder %v588, 0
    %v590 = vsub.s32 0, %v588
    %v591 = vsel %vm589, %v590, %v588
    %v592 = vclz %v591
    %v593 = vsub.s32 %v592, 2
    %vm594 = vcmp.gt.s32.totalorder 0, %v593
    %v595 = vsel %vm594, 0, %v593
    %v596 = vsub.s32 32, %v595
    %v597 = vshll.u32 %v588, %v595
    %v598 = vshrl.u32 %v580, %v596
    %v599 = vor.u32 %v597, %v598
    %v600 = vsub.s32 4294967266, %v595
    %v601 = vadd.s32 %v600, 127
    %v602 = vshll.u32 %v601, 23
    %v603 = vor.u32 4788187, %v602
    %v604 = vand.u32 2147483647, %v603
    %v606 = vcvt.s32.f32 %v599
    %v607 = vmul.f32 %v606, %v604
    %v608 = vxor.u32 %v607, 2147483648
    %v609 = vsel %vm488, %v608, %v607
    %v610 = vsub.s32 4, %v586
    %v611 = vsel %vm488, %v610, %v586
    %v612 = vsel %vm487, %v172, %v609
    %v613 = vsel %vm487, 0, %v611
    %v614 = vmul.f32 %v612, %v612
    %v615 = vmul.f32 %v614, -0.001358992
    %v616 = vadd.f32 %v615, 0.041655596
    %v617 = vmul.f32 %v614, %v616
    %v618 = vadd.f32 %v617, -0.4999988
    %v619 = vmul.f32 %v614, %v618
    %v620 = vadd.f32 1.0, %v619
    %v621 = vmul.f32 %v612, %v612
    %v622 = vmul.f32 %v621, -0.00019511016
    %v623 = vadd.f32 %v622, 0.008332121
    %v624 = vmul.f32 %v621, %v623
    %v625 = vadd.f32 %v624, -0.16666654
    %v626 = vmul.f32 %v621, %v625
    %v627 = vadd.f32 %v626, 1.0
    %v628 = vmul.f32 %v627, %v612
    %vm629 = vweird.f32 %v172
    %v630 = vand.u32 %v613, 3
    %vm631 = vcmp.lt.s32.totalorder %v630, 2
    %vm632 = vcmp.eq.s32.totalorder %v630, 0
    %v633 = vxor.u32 %v628, 2147483648
    %v634 = vsel %vm632, %v620, %v633
    %vm635 = vcmp.eq.s32.totalorder %v630, 2
    %v636 = vxor.u32 %v620, 2147483648
    %v637 = vsel %vm635, %v636, %v628
    %v638 = vsel %vm631, %v634, %v637
    %v639 = vsel %vm629, nan, %v638
    %v640 = vand.u32 2147483647, %v173
    %vm641 = vcmp.le.f32.partialorder %v640, 0.7853982
    %vm642 = vcmp.lt.s32.totalorder %v173, 0
    %v643 = vand.u32 %v173, 2139095040
    %v644 = vshrl.u32 %v643, 23
    %v645 = vsub.s32 %v644, 127
    %v646 = vand.u32 2147483647, %v173
    %v647 = vand.u32 %v646, 8388607
    %v648 = vor.u32 %v647, 8388608
    %v649 = vsub.s32 0, %v648
    %v650 = vadd.s32 %v645, 1
    %vm651 = vcmp.gt.s32.totalorder %v650, 0
    %v652 = vsel %vm651, %v650, 0
    %v653 = vshrl.u32 %v652, 5
    %v654 = vand.u32 %v652, 31
    %v655 = vsub.s32 32, %v654
    %v656 = vshrl.u32 683565275, %v655
    %v657 = vshll.u32 683565275, %v654
    %v658 = vshrl.u32 2475754826, %v655
    %v659 = vor.u32 %v657, %v658
    %v660 = vshll.u32 2475754826, %v654
    %v661 = vshrl.u32 2131351028, %v655
    %v662 = vor.u32 %v660, %v661
    %v663 = vshll.u32 2131351028, %v654
    %v664 = vshrl.u32 2102212464, %v655
    %v665 = vor.u32 %v663, %v664
    %v666 = vshll.u32 2102212464, %v654
    %v667 = vshrl.u32 920167782, %v655
    %v668 = vor.u32 %v666, %v667
    %v669 = vshll.u32 920167782, %v654
    %v670 = vshrl.u32 1326507024, %v655
    %v671 = vor.u32 %v669, %v670
    %vm672 = vcmp.lt.s32.totalorder %v653, 1
    %vm673 = vcmp.lt.s32.totalorder %v653, 2
    %vm674 = vcmp.lt.s32.totalorder %v653, 3
    %vm675 = vcmp.lt.s32.totalorder %v653, 4
    %v676 = vsel %vm672, %v656, %v659
    %v677 = vsel %vm675, %v665, 2102212464
    %v678 = vsel %vm674, %v662, %v677
    %v679 = vsel %vm673, %v676, %v678
    %v680 = vsel %vm672, %v659, %v662
    %v681 = vsel %vm675, %v668, 920167782
    %v682 = vsel %vm674, %v665, %v681
    %v683 = vsel %vm673, %v680, %v682
    %v684 = vsel %vm672, %v662, %v665
    %v685 = vsel %vm675, %v671, 1326507024
    %v686 = vsel %vm674, %v668, %v685
    %v687 = vsel %vm673, %v684, %v686
    %v688 = vshll.u32 %v648, 8
    %v689 = vand.u32 %v688, 65535
    %v690 = vshrl.u32 %v688, 16
    %v691 = vand.u32 %v687, 65535
    %v692 = vshrl.u32 %v687, 16
    %v693 = vmul.u32 %v689, %v691
    %v694 = vmul.u32 %v689, %v692
    %v695 = vmul.u32 %v690, %v691
    %v696 = vmul.u32 %v690, %v692
    %v697 = vshll.u32 %v694, 16
    %v698 = vshrl.u32 %v694, 16
    %v699 = vshll.u32 %v695, 16
    %v700 = vshrl.u32 %v695, 16
    %vm701 = vc.u32 %v693, %v697
    %v702 = vsel %vm701, 1, 0
    %v703 = vadd.s32 %v693, %v697
    %v704 = vadd.s32 %v696, %v702
    %vm705 = vc.u32 %v703, %v699
    %v706 = vsel %vm705, 1, 0
    %v707 = vadd.s32 %v703, %v699
    %v708 = vadd.s32 %v704, %v706
    %v709 = vadd.s32 %v708, %v698
    %v710 = vadd.s32 %v709, %v700
    %v711 = vand.u32 %v688, 65535
    %v712 = vshrl.u32 %v688, 16
    %v713 = vand.u32 %v683, 65535
    %v714 = vshrl.u32 %v683, 16
    %v715 = vmul.u32 %v711, %v713
    %v716 = vmul.u32 %v711, %v714
    %v717 = vmul.u32 %v712, %v713
    %v718 = vmul.u32 %v712, %v714
    %v719 = vshll.u32 %v716, 16
    %v720 = vshrl.u32 %v716, 16
    %v721 = vshll.u32 %v717, 16
    %v722 = vshrl.u32 %v717, 16
    %vm723 = vc.u32 %v715, %v719
    %v724 = vsel %vm723, 1, 0
    %v725 = vadd.s32 %v715, %v719
    %v726 = vadd.s32 %v718, %v724
    %vm727 = vc.u32 %v725, %v721
    %v728 = vsel %vm727, 1, 0
    %v729 = vadd.s32 %v725, %v721
    %v730 = vadd.s32 %v726, %v728
    %v731 = vadd.s32 %v730, %v720
    %v732 = vadd.s32 %v731, %v722
    %v733 = vmul.u32 %v688, %v679
    %v734 = vadd.s32 %v710, %v729
    %vm735 = vc.u32 %v710, %v729
    %v736 = vadd.s32 %v732, 1
    %v737 = vsel %vm735, %v736, %v732
    %v738 = vadd.s32 %v733, %v737
    %v739 = vadd.s32 %v738, 536870912
    %v740 = vshrl.u32 %v739, 30
    %v741 = vshll.u32 %v740, 30
    %v742 = vsub.s32 %v738, %v741
    %vm743 = vcmp.lt.s32.totalorder %v742, 0
    %v744 = vsub.s32 0, %v742
    %v745 = vsel %vm743, %v744, %v742
    %v746 = vclz %v745
    %v747 = vsub.s32 %v746, 2
    %vm748 = vcmp.gt.s32.totalorder 0, %v747
    %v749 = vsel %vm748, 0, %v747
    %v750 = vsub.s32 32, %v749
    %v751 = vshll.u32 %v742, %v749
    %v752 = vshrl.u32 %v734, %v750
    %v753 = vor.u32 %v751, %v752
    %v754 = vsub.s32 4294967266, %v749
    %v755 = vadd.s32 %v754, 127
    %v756 = vshll.u32 %v755, 23
    %v757 = vor.u32 4788187, %v756
    %v758 = vand.u32 2147483647, %v757
    %v760 = vcvt.s32.f32 %v753
    %v761 = vmul.f32 %v760, %v758
    %v762 = vxor.u32 %v761, 2147483648
    %v763 = vsel %vm642, %v762, %v761
    %v764 = vsub.s32 4, %v740
    %v765 = vsel %vm642, %v764, %v740
    %v766 = vsel %vm641, %v173, %v763
    %v767 = vsel %vm641, 0, %v765
    %v768 = vmul.f32 %v766, %v766
    %v769 = vmul.f32 %v768, -0.001358992
    %v770 = vadd.f32 %v769, 0.041655596
    %v771 = vmul.f32 %v768, %v770
    %v772 = vadd.f32 %v771, -0.4999988
    %v773 = vmul.f32 %v768, %v772
    %v774 = vadd.f32 1.0, %v773
    %v775 = vmul.f32 %v766, %v766
    %v776 = vmul.f32 %v775, -0.00019511016
    %v777 = vadd.f32 %v776, 0.008332121
    %v778 = vmul.f32 %v775, %v777
    %v779 = vadd.f32 %v778, -0.16666654
    %v780 = vmul.f32 %v775, %v779
    %v781 = vadd.f32 %v780, 1.0
    %v782 = vmul.f32 %v781, %v766
    %vm783 = vweird.f32 %v173
    %v784 = vand.u32 %v767, 3
    %vm785 = vcmp.lt.s32.totalorder %v784, 2
    %vm786 = vcmp.eq.s32.totalorder %v784, 0
    %v787 = vxor.u32 %v782, 2147483648
    %v788 = vsel %vm786, %v774, %v787
    %vm789 = vcmp.eq.s32.totalorder %v784, 2
    %v790 = vxor.u32 %v774, 2147483648
    %v791 = vsel %vm789, %v790, %v782
    %v792 = vsel %vm785, %v788, %v791
    %v793 = vsel %vm783, nan, %v792
    %v794 = vand.u32 2147483647, %v174
    %vm795 = vcmp.le.f32.partialorder %v794, 0.7853982
    %vm796 = vcmp.lt.s32.totalorder %v174, 0
    %v797 = vand.u32 %v174, 2139095040
    %v798 = vshrl.u32 %v797, 23
    %v799 = vsub.s32 %v798, 127
    %v800 = vand.u32 2147483647, %v174
    %v801 = vand.u32 %v800, 8388607
    %v802 = vor.u32 %v801, 8388608
    %v803 = vsub.s32 0, %v802
    %v804 = vadd.s32 %v799, 1
    %vm805 = vcmp.gt.s32.totalorder %v804, 0
    %v806 = vsel %vm805, %v804, 0
    %v807 = vshrl.u32 %v806, 5
    %v808 = vand.u32 %v806, 31
    %v809 = vsub.s32 32, %v808
    %v810 = vshrl.u32 683565275, %v809
    %v811 = vshll.u32 683565275, %v808
    %v812 = vshrl.u32 2475754826, %v809
    %v813 = vor.u32 %v811, %v812
    %v814 = vshll.u32 2475754826, %v808
    %v815 = vshrl.u32 2131351028, %v809
    %v816 = vor.u32 %v814, %v815
    %v817 = vshll.u32 2131351028, %v808
    %v818 = vshrl.u32 2102212464, %v809
    %v819 = vor.u32 %v817, %v818
    %v820 = vshll.u32 2102212464, %v808
    %v821 = vshrl.u32 920167782, %v809
    %v822 = vor.u32 %v820, %v821
    %v823 = vshll.u32 920167782, %v808
    %v824 = vshrl.u32 1326507024, %v809
    %v825 = vor.u32 %v823, %v824
    %vm826 = vcmp.lt.s32.totalorder %v807, 1
    %vm827 = vcmp.lt.s32.totalorder %v807, 2
    %vm828 = vcmp.lt.s32.totalorder %v807, 3
    %vm829 = vcmp.lt.s32.totalorder %v807, 4
    %v830 = vsel %vm826, %v810, %v813
    %v831 = vsel %vm829, %v819, 2102212464
    %v832 = vsel %vm828, %v816, %v831
    %v833 = vsel %vm827, %v830, %v832
    %v834 = vsel %vm826, %v813, %v816
    %v835 = vsel %vm829, %v822, 920167782
    %v836 = vsel %vm828, %v819, %v835
    %v837 = vsel %vm827, %v834, %v836
    %v838 = vsel %vm826, %v816, %v819
    %v839 = vsel %vm829, %v825, 1326507024
    %v840 = vsel %vm828, %v822, %v839
    %v841 = vsel %vm827, %v838, %v840
    %v842 = vshll.u32 %v802, 8
    %v843 = vand.u32 %v842, 65535
    %v844 = vshrl.u32 %v842, 16
    %v845 = vand.u32 %v841, 65535
    %v846 = vshrl.u32 %v841, 16
    %v847 = vmul.u32 %v843, %v845
    %v848 = vmul.u32 %v843, %v846
    %v849 = vmul.u32 %v844, %v845
    %v850 = vmul.u32 %v844, %v846
    %v851 = vshll.u32 %v848, 16
    %v852 = vshrl.u32 %v848, 16
    %v853 = vshll.u32 %v849, 16
    %v854 = vshrl.u32 %v849, 16
    %vm855 = vc.u32 %v847, %v851
    %v856 = vsel %vm855, 1, 0
    %v857 = vadd.s32 %v847, %v851
    %v858 = vadd.s32 %v850, %v856
    %vm859 = vc.u32 %v857, %v853
    %v860 = vsel %vm859, 1, 0
    %v861 = vadd.s32 %v857, %v853
    %v862 = vadd.s32 %v858, %v860
    %v863 = vadd.s32 %v862, %v852
    %v864 = vadd.s32 %v863, %v854
    %v865 = vand.u32 %v842, 65535
    %v866 = vshrl.u32 %v842, 16
    %v867 = vand.u32 %v837, 65535
    %v868 = vshrl.u32 %v837, 16
    %v869 = vmul.u32 %v865, %v867
    %v870 = vmul.u32 %v865, %v868
    %v871 = vmul.u32 %v866, %v867
    %v872 = vmul.u32 %v866, %v868
    %v873 = vshll.u32 %v870, 16
    %v874 = vshrl.u32 %v870, 16
    %v875 = vshll.u32 %v871, 16
    %v876 = vshrl.u32 %v871, 16
    %vm877 = vc.u32 %v869, %v873
    %v878 = vsel %vm877, 1, 0
    %v879 = vadd.s32 %v869, %v873
    %v880 = vadd.s32 %v872, %v878
    %vm881 = vc.u32 %v879, %v875
    %v882 = vsel %vm881, 1, 0
    %v883 = vadd.s32 %v879, %v875
    %v884 = vadd.s32 %v880, %v882
    %v885 = vadd.s32 %v884, %v874
    %v886 = vadd.s32 %v885, %v876
    %v887 = vmul.u32 %v842, %v833
    %v888 = vadd.s32 %v864, %v883
    %vm889 = vc.u32 %v864, %v883
    %v890 = vadd.s32 %v886, 1
    %v891 = vsel %vm889, %v890, %v886
    %v892 = vadd.s32 %v887, %v891
    %v893 = vadd.s32 %v892, 536870912
    %v894 = vshrl.u32 %v893, 30
    %v895 = vshll.u32 %v894, 30
    %v896 = vsub.s32 %v892, %v895
    %vm897 = vcmp.lt.s32.totalorder %v896, 0
    %v898 = vsub.s32 0, %v896
    %v899 = vsel %vm897, %v898, %v896
    %v900 = vclz %v899
    %v901 = vsub.s32 %v900, 2
    %vm902 = vcmp.gt.s32.totalorder 0, %v901
    %v903 = vsel %vm902, 0, %v901
    %v904 = vsub.s32 32, %v903
    %v905 = vshll.u32 %v896, %v903
    %v906 = vshrl.u32 %v888, %v904
    %v907 = vor.u32 %v905, %v906
    %v908 = vsub.s32 4294967266, %v903
    %v909 = vadd.s32 %v908, 127
    %v910 = vshll.u32 %v909, 23
    %v911 = vor.u32 4788187, %v910
    %v912 = vand.u32 2147483647, %v911
    %v914 = vcvt.s32.f32 %v907
    %v915 = vmul.f32 %v914, %v912
    %v916 = vxor.u32 %v915, 2147483648
    %v917 = vsel %vm796, %v916, %v915
    %v918 = vsub.s32 4, %v894
    %v919 = vsel %vm796, %v918, %v894
    %v920 = vsel %vm795, %v174, %v917
    %v921 = vsel %vm795, 0, %v919
    %v922 = vmul.f32 %v920, %v920
    %v923 = vmul.f32 %v922, -0.001358992
    %v924 = vadd.f32 %v923, 0.041655596
    %v925 = vmul.f32 %v922, %v924
    %v926 = vadd.f32 %v925, -0.4999988
    %v927 = vmul.f32 %v922, %v926
    %v928 = vadd.f32 1.0, %v927
    %v929 = vmul.f32 %v920, %v920
    %v930 = vmul.f32 %v929, -0.00019511016
    %v931 = vadd.f32 %v930, 0.008332121
    %v932 = vmul.f32 %v929, %v931
    %v933 = vadd.f32 %v932, -0.16666654
    %v934 = vmul.f32 %v929, %v933
    %v935 = vadd.f32 %v934, 1.0
    %v936 = vmul.f32 %v935, %v920
    %vm937 = vweird.f32 %v174
    %v938 = vand.u32 %v921, 3
    %vm939 = vcmp.lt.s32.totalorder %v938, 2
    %vm940 = vcmp.eq.s32.totalorder %v938, 0
    %v941 = vxor.u32 %v936, 2147483648
    %v942 = vsel %vm940, %v928, %v941
    %vm943 = vcmp.eq.s32.totalorder %v938, 2
    %v944 = vxor.u32 %v928, 2147483648
    %v945 = vsel %vm943, %v944, %v936
    %v946 = vsel %vm939, %v942, %v945
    %v947 = vsel %vm937, nan, %v946
    %v948 = vand.u32 2147483647, %v175
    %vm949 = vcmp.le.f32.partialorder %v948, 0.7853982
    %vm950 = vcmp.lt.s32.totalorder %v175, 0
    %v951 = vand.u32 %v175, 2139095040
    %v952 = vshrl.u32 %v951, 23
    %v953 = vsub.s32 %v952, 127
    %v954 = vand.u32 2147483647, %v175
    %v955 = vand.u32 %v954, 8388607
    %v956 = vor.u32 %v955, 8388608
    %v957 = vsub.s32 0, %v956
    %v958 = vadd.s32 %v953, 1
    %vm959 = vcmp.gt.s32.totalorder %v958, 0
    %v960 = vsel %vm959, %v958, 0
    %v961 = vshrl.u32 %v960, 5
    %v962 = vand.u32 %v960, 31
    %v963 = vsub.s32 32, %v962
    %v964 = vshrl.u32 683565275, %v963
    %v965 = vshll.u32 683565275, %v962
    %v966 = vshrl.u32 2475754826, %v963
    %v967 = vor.u32 %v965, %v966
    %v968 = vshll.u32 2475754826, %v962
    %v969 = vshrl.u32 2131351028, %v963
    %v970 = vor.u32 %v968, %v969
    %v971 = vshll.u32 2131351028, %v962
    %v972 = vshrl.u32 2102212464, %v963
    %v973 = vor.u32 %v971, %v972
    %v974 = vshll.u32 2102212464, %v962
    %v975 = vshrl.u32 920167782, %v963
    %v976 = vor.u32 %v974, %v975
    %v977 = vshll.u32 920167782, %v962
    %v978 = vshrl.u32 1326507024, %v963
    %v979 = vor.u32 %v977, %v978
    %vm980 = vcmp.lt.s32.totalorder %v961, 1
    %vm981 = vcmp.lt.s32.totalorder %v961, 2
    %vm982 = vcmp.lt.s32.totalorder %v961, 3
    %vm983 = vcmp.lt.s32.totalorder %v961, 4
    %v984 = vsel %vm980, %v964, %v967
    %v985 = vsel %vm983, %v973, 2102212464
    %v986 = vsel %vm982, %v970, %v985
    %v987 = vsel %vm981, %v984, %v986
    %v988 = vsel %vm980, %v967, %v970
    %v989 = vsel %vm983, %v976, 920167782
    %v990 = vsel %vm982, %v973, %v989
    %v991 = vsel %vm981, %v988, %v990
    %v992 = vsel %vm980, %v970, %v973
    %v993 = vsel %vm983, %v979, 1326507024
    %v994 = vsel %vm982, %v976, %v993
    %v995 = vsel %vm981, %v992, %v994
    %v996 = vshll.u32 %v956, 8
    %v997 = vand.u32 %v996, 65535
    %v998 = vshrl.u32 %v996, 16
    %v999 = vand.u32 %v995, 65535
    %v1000 = vshrl.u32 %v995, 16
    %v1001 = vmul.u32 %v997, %v999
    %v1002 = vmul.u32 %v997, %v1000
    %v1003 = vmul.u32 %v998, %v999
    %v1004 = vmul.u32 %v998, %v1000
    %v1005 = vshll.u32 %v1002, 16
    %v1006 = vshrl.u32 %v1002, 16
    %v1007 = vshll.u32 %v1003, 16
    %v1008 = vshrl.u32 %v1003, 16
    %vm1009 = vc.u32 %v1001, %v1005
    %v1010 = vsel %vm1009, 1, 0
    %v1011 = vadd.s32 %v1001, %v1005
    %v1012 = vadd.s32 %v1004, %v1010
    %vm1013 = vc.u32 %v1011, %v1007
    %v1014 = vsel %vm1013, 1, 0
    %v1015 = vadd.s32 %v1011, %v1007
    %v1016 = vadd.s32 %v1012, %v1014
    %v1017 = vadd.s32 %v1016, %v1006
    %v1018 = vadd.s32 %v1017, %v1008
    %v1019 = vand.u32 %v996, 65535
    %v1020 = vshrl.u32 %v996, 16
    %v1021 = vand.u32 %v991, 65535
    %v1022 = vshrl.u32 %v991, 16
    %v1023 = vmul.u32 %v1019, %v1021
    %v1024 = vmul.u32 %v1019, %v1022
    %v1025 = vmul.u32 %v1020, %v1021
    %v1026 = vmul.u32 %v1020, %v1022
    %v1027 = vshll.u32 %v1024, 16
    %v1028 = vshrl.u32 %v1024, 16
    %v1029 = vshll.u32 %v1025, 16
    %v1030 = vshrl.u32 %v1025, 16
    %vm1031 = vc.u32 %v1023, %v1027
    %v1032 = vsel %vm1031, 1, 0
    %v1033 = vadd.s32 %v1023, %v1027
    %v1034 = vadd.s32 %v1026, %v1032
    %vm1035 = vc.u32 %v1033, %v1029
    %v1036 = vsel %vm1035, 1, 0
    %v1037 = vadd.s32 %v1033, %v1029
    %v1038 = vadd.s32 %v1034, %v1036
    %v1039 = vadd.s32 %v1038, %v1028
    %v1040 = vadd.s32 %v1039, %v1030
    %v1041 = vmul.u32 %v996, %v987
    %v1042 = vadd.s32 %v1018, %v1037
    %vm1043 = vc.u32 %v1018, %v1037
    %v1044 = vadd.s32 %v1040, 1
    %v1045 = vsel %vm1043, %v1044, %v1040
    %v1046 = vadd.s32 %v1041, %v1045
    %v1047 = vadd.s32 %v1046, 536870912
    %v1048 = vshrl.u32 %v1047, 30
    %v1049 = vshll.u32 %v1048, 30
    %v1050 = vsub.s32 %v1046, %v1049
    %vm1051 = vcmp.lt.s32.totalorder %v1050, 0
    %v1052 = vsub.s32 0, %v1050
    %v1053 = vsel %vm1051, %v1052, %v1050
    %v1054 = vclz %v1053
    %v1055 = vsub.s32 %v1054, 2
    %vm1056 = vcmp.gt.s32.totalorder 0, %v1055
    %v1057 = vsel %vm1056, 0, %v1055
    %v1058 = vsub.s32 32, %v1057
    %v1059 = vshll.u32 %v1050, %v1057
    %v1060 = vshrl.u32 %v1042, %v1058
    %v1061 = vor.u32 %v1059, %v1060
    %v1062 = vsub.s32 4294967266, %v1057
    %v1063 = vadd.s32 %v1062, 127
    %v1064 = vshll.u32 %v1063, 23
    %v1065 = vor.u32 4788187, %v1064
    %v1066 = vand.u32 2147483647, %v1065
    %v1068 = vcvt.s32.f32 %v1061
    %v1069 = vmul.f32 %v1068, %v1066
    %v1070 = vxor.u32 %v1069, 2147483648
    %v1071 = vsel %vm950, %v1070, %v1069
    %v1072 = vsub.s32 4, %v1048
    %v1073 = vsel %vm950, %v1072, %v1048
    %v1074 = vsel %vm949, %v175, %v1071
    %v1075 = vsel %vm949, 0, %v1073
    %v1076 = vmul.f32 %v1074, %v1074
    %v1077 = vmul.f32 %v1076, -0.001358992
    %v1078 = vadd.f32 %v1077, 0.041655596
    %v1079 = vmul.f32 %v1076, %v1078
    %v1080 = vadd.f32 %v1079, -0.4999988
    %v1081 = vmul.f32 %v1076, %v1080
    %v1082 = vadd.f32 1.0, %v1081
    %v1083 = vmul.f32 %v1074, %v1074
    %v1084 = vmul.f32 %v1083, -0.00019511016
    %v1085 = vadd.f32 %v1084, 0.008332121
    %v1086 = vmul.f32 %v1083, %v1085
    %v1087 = vadd.f32 %v1086, -0.16666654
    %v1088 = vmul.f32 %v1083, %v1087
    %v1089 = vadd.f32 %v1088, 1.0
    %v1090 = vmul.f32 %v1089, %v1074
    %vm1091 = vweird.f32 %v175
    %v1092 = vand.u32 %v1075, 3
    %vm1093 = vcmp.lt.s32.totalorder %v1092, 2
    %vm1094 = vcmp.eq.s32.totalorder %v1092, 0
    %v1095 = vxor.u32 %v1090, 2147483648
    %v1096 = vsel %vm1094, %v1082, %v1095
    %vm1097 = vcmp.eq.s32.totalorder %v1092, 2
    %v1098 = vxor.u32 %v1082, 2147483648
    %v1099 = vsel %vm1097, %v1098, %v1090
    %v1100 = vsel %vm1093, %v1096, %v1099
    %v1101 = vsel %vm1091, nan, %v1100
    %v1102 = vand.u32 2147483647, %v176
    %vm1103 = vcmp.le.f32.partialorder %v1102, 0.7853982
    %vm1104 = vcmp.lt.s32.totalorder %v176, 0
    %v1105 = vand.u32 %v176, 2139095040
    %v1106 = vshrl.u32 %v1105, 23
    %v1107 = vsub.s32 %v1106, 127
    %v1108 = vand.u32 2147483647, %v176
    %v1109 = vand.u32 %v1108, 8388607
    %v1110 = vor.u32 %v1109, 8388608
    %v1111 = vsub.s32 0, %v1110
    %v1112 = vadd.s32 %v1107, 1
    %vm1113 = vcmp.gt.s32.totalorder %v1112, 0
    %v1114 = vsel %vm1113, %v1112, 0
    %v1115 = vshrl.u32 %v1114, 5
    %v1116 = vand.u32 %v1114, 31
    %v1117 = vsub.s32 32, %v1116
    %v1118 = vshrl.u32 683565275, %v1117
    %v1119 = vshll.u32 683565275, %v1116
    %v1120 = vshrl.u32 2475754826, %v1117
    %v1121 = vor.u32 %v1119, %v1120
    %v1122 = vshll.u32 2475754826, %v1116
    %v1123 = vshrl.u32 2131351028, %v1117
    %v1124 = vor.u32 %v1122, %v1123
    %v1125 = vshll.u32 2131351028, %v1116
    %v1126 = vshrl.u32 2102212464, %v1117
    %v1127 = vor.u32 %v1125, %v1126
    %v1128 = vshll.u32 2102212464, %v1116
    %v1129 = vshrl.u32 920167782, %v1117
    %v1130 = vor.u32 %v1128, %v1129
    %v1131 = vshll.u32 920167782, %v1116
    %v1132 = vshrl.u32 1326507024, %v1117
    %v1133 = vor.u32 %v1131, %v1132
    %vm1134 = vcmp.lt.s32.totalorder %v1115, 1
    %vm1135 = vcmp.lt.s32.totalorder %v1115, 2
    %vm1136 = vcmp.lt.s32.totalorder %v1115, 3
    %vm1137 = vcmp.lt.s32.totalorder %v1115, 4
    %v1138 = vsel %vm1134, %v1118, %v1121
    %v1139 = vsel %vm1137, %v1127, 2102212464
    %v1140 = vsel %vm1136, %v1124, %v1139
    %v1141 = vsel %vm1135, %v1138, %v1140
    %v1142 = vsel %vm1134, %v1121, %v1124
    %v1143 = vsel %vm1137, %v1130, 920167782
    %v1144 = vsel %vm1136, %v1127, %v1143
    %v1145 = vsel %vm1135, %v1142, %v1144
    %v1146 = vsel %vm1134, %v1124, %v1127
    %v1147 = vsel %vm1137, %v1133, 1326507024
    %v1148 = vsel %vm1136, %v1130, %v1147
    %v1149 = vsel %vm1135, %v1146, %v1148
    %v1150 = vshll.u32 %v1110, 8
    %v1151 = vand.u32 %v1150, 65535
    %v1152 = vshrl.u32 %v1150, 16
    %v1153 = vand.u32 %v1149, 65535
    %v1154 = vshrl.u32 %v1149, 16
    %v1155 = vmul.u32 %v1151, %v1153
    %v1156 = vmul.u32 %v1151, %v1154
    %v1157 = vmul.u32 %v1152, %v1153
    %v1158 = vmul.u32 %v1152, %v1154
    %v1159 = vshll.u32 %v1156, 16
    %v1160 = vshrl.u32 %v1156, 16
    %v1161 = vshll.u32 %v1157, 16
    %v1162 = vshrl.u32 %v1157, 16
    %vm1163 = vc.u32 %v1155, %v1159
    %v1164 = vsel %vm1163, 1, 0
    %v1165 = vadd.s32 %v1155, %v1159
    %v1166 = vadd.s32 %v1158, %v1164
    %vm1167 = vc.u32 %v1165, %v1161
    %v1168 = vsel %vm1167, 1, 0
    %v1169 = vadd.s32 %v1165, %v1161
    %v1170 = vadd.s32 %v1166, %v1168
    %v1171 = vadd.s32 %v1170, %v1160
    %v1172 = vadd.s32 %v1171, %v1162
    %v1173 = vand.u32 %v1150, 65535
    %v1174 = vshrl.u32 %v1150, 16
    %v1175 = vand.u32 %v1145, 65535
    %v1176 = vshrl.u32 %v1145, 16
    %v1177 = vmul.u32 %v1173, %v1175
    %v1178 = vmul.u32 %v1173, %v1176
    %v1179 = vmul.u32 %v1174, %v1175
    %v1180 = vmul.u32 %v1174, %v1176
    %v1181 = vshll.u32 %v1178, 16
    %v1182 = vshrl.u32 %v1178, 16
    %v1183 = vshll.u32 %v1179, 16
    %v1184 = vshrl.u32 %v1179, 16
    %vm1185 = vc.u32 %v1177, %v1181
    %v1186 = vsel %vm1185, 1, 0
    %v1187 = vadd.s32 %v1177, %v1181
    %v1188 = vadd.s32 %v1180, %v1186
    %vm1189 = vc.u32 %v1187, %v1183
    %v1190 = vsel %vm1189, 1, 0
    %v1191 = vadd.s32 %v1187, %v1183
    %v1192 = vadd.s32 %v1188, %v1190
    %v1193 = vadd.s32 %v1192, %v1182
    %v1194 = vadd.s32 %v1193, %v1184
    %v1195 = vmul.u32 %v1150, %v1141
    %v1196 = vadd.s32 %v1172, %v1191
    %vm1197 = vc.u32 %v1172, %v1191
    %v1198 = vadd.s32 %v1194, 1
    %v1199 = vsel %vm1197, %v1198, %v1194
    %v1200 = vadd.s32 %v1195, %v1199
    %v1201 = vadd.s32 %v1200, 536870912
    %v1202 = vshrl.u32 %v1201, 30
    %v1203 = vshll.u32 %v1202, 30
    %v1204 = vsub.s32 %v1200, %v1203
    %vm1205 = vcmp.lt.s32.totalorder %v1204, 0
    %v1206 = vsub.s32 0, %v1204
    %v1207 = vsel %vm1205, %v1206, %v1204
    %v1208 = vclz %v1207
    %v1209 = vsub.s32 %v1208, 2
    %vm1210 = vcmp.gt.s32.totalorder 0, %v1209
    %v1211 = vsel %vm1210, 0, %v1209
    %v1212 = vsub.s32 32, %v1211
    %v1213 = vshll.u32 %v1204, %v1211
    %v1214 = vshrl.u32 %v1196, %v1212
    %v1215 = vor.u32 %v1213, %v1214
    %v1216 = vsub.s32 4294967266, %v1211
    %v1217 = vadd.s32 %v1216, 127
    %v1218 = vshll.u32 %v1217, 23
    %v1219 = vor.u32 4788187, %v1218
    %v1220 = vand.u32 2147483647, %v1219
    %v1222 = vcvt.s32.f32 %v1215
    %v1223 = vmul.f32 %v1222, %v1220
    %v1224 = vxor.u32 %v1223, 2147483648
    %v1225 = vsel %vm1104, %v1224, %v1223
    %v1226 = vsub.s32 4, %v1202
    %v1227 = vsel %vm1104, %v1226, %v1202
    %v1228 = vsel %vm1103, %v176, %v1225
    %v1229 = vsel %vm1103, 0, %v1227
    %v1230 = vmul.f32 %v1228, %v1228
    %v1231 = vmul.f32 %v1230, -0.001358992
    %v1232 = vadd.f32 %v1231, 0.041655596
    %v1233 = vmul.f32 %v1230, %v1232
    %v1234 = vadd.f32 %v1233, -0.4999988
    %v1235 = vmul.f32 %v1230, %v1234
    %v1236 = vadd.f32 1.0, %v1235
    %v1237 = vmul.f32 %v1228, %v1228
    %v1238 = vmul.f32 %v1237, -0.00019511016
    %v1239 = vadd.f32 %v1238, 0.008332121
    %v1240 = vmul.f32 %v1237, %v1239
    %v1241 = vadd.f32 %v1240, -0.16666654
    %v1242 = vmul.f32 %v1237, %v1241
    %v1243 = vadd.f32 %v1242, 1.0
    %v1244 = vmul.f32 %v1243, %v1228
    %vm1245 = vweird.f32 %v176
    %v1246 = vand.u32 %v1229, 3
    %vm1247 = vcmp.lt.s32.totalorder %v1246, 2
    %vm1248 = vcmp.eq.s32.totalorder %v1246, 0
    %v1249 = vxor.u32 %v1244, 2147483648
    %v1250 = vsel %vm1248, %v1236, %v1249
    %vm1251 = vcmp.eq.s32.totalorder %v1246, 2
    %v1252 = vxor.u32 %v1236, 2147483648
    %v1253 = vsel %vm1251, %v1252, %v1244
    %v1254 = vsel %vm1247, %v1250, %v1253
    %v1255 = vsel %vm1245, nan, %v1254
    %v1256 = vand.u32 2147483647, %v177
    %vm1257 = vcmp.le.f32.partialorder %v1256, 0.7853982
    %vm1258 = vcmp.lt.s32.totalorder %v177, 0
    %v1259 = vand.u32 %v177, 2139095040
    %v1260 = vshrl.u32 %v1259, 23
    %v1261 = vsub.s32 %v1260, 127
    %v1262 = vand.u32 2147483647, %v177
    %v1263 = vand.u32 %v1262, 8388607
    %v1264 = vor.u32 %v1263, 8388608
    %v1265 = vsub.s32 0, %v1264
    %v1266 = vadd.s32 %v1261, 1
    %vm1267 = vcmp.gt.s32.totalorder %v1266, 0
    %v1268 = vsel %vm1267, %v1266, 0
    %v1269 = vshrl.u32 %v1268, 5
    %v1270 = vand.u32 %v1268, 31
    %v1271 = vsub.s32 32, %v1270
    %v1272 = vshrl.u32 683565275, %v1271
    %v1273 = vshll.u32 683565275, %v1270
    %v1274 = vshrl.u32 2475754826, %v1271
    %v1275 = vor.u32 %v1273, %v1274
    %v1276 = vshll.u32 2475754826, %v1270
    %v1277 = vshrl.u32 2131351028, %v1271
    %v1278 = vor.u32 %v1276, %v1277
    %v1279 = vshll.u32 2131351028, %v1270
    %v1280 = vshrl.u32 2102212464, %v1271
    %v1281 = vor.u32 %v1279, %v1280
    %v1282 = vshll.u32 2102212464, %v1270
    %v1283 = vshrl.u32 920167782, %v1271
    %v1284 = vor.u32 %v1282, %v1283
    %v1285 = vshll.u32 920167782, %v1270
    %v1286 = vshrl.u32 1326507024, %v1271
    %v1287 = vor.u32 %v1285, %v1286
    %vm1288 = vcmp.lt.s32.totalorder %v1269, 1
    %vm1289 = vcmp.lt.s32.totalorder %v1269, 2
    %vm1290 = vcmp.lt.s32.totalorder %v1269, 3
    %vm1291 = vcmp.lt.s32.totalorder %v1269, 4
    %v1292 = vsel %vm1288, %v1272, %v1275
    %v1293 = vsel %vm1291, %v1281, 2102212464
    %v1294 = vsel %vm1290, %v1278, %v1293
    %v1295 = vsel %vm1289, %v1292, %v1294
    %v1296 = vsel %vm1288, %v1275, %v1278
    %v1297 = vsel %vm1291, %v1284, 920167782
    %v1298 = vsel %vm1290, %v1281, %v1297
    %v1299 = vsel %vm1289, %v1296, %v1298
    %v1300 = vsel %vm1288, %v1278, %v1281
    %v1301 = vsel %vm1291, %v1287, 1326507024
    %v1302 = vsel %vm1290, %v1284, %v1301
    %v1303 = vsel %vm1289, %v1300, %v1302
    %v1304 = vshll.u32 %v1264, 8
    %v1305 = vand.u32 %v1304, 65535
    %v1306 = vshrl.u32 %v1304, 16
    %v1307 = vand.u32 %v1303, 65535
    %v1308 = vshrl.u32 %v1303, 16
    %v1309 = vmul.u32 %v1305, %v1307
    %v1310 = vmul.u32 %v1305, %v1308
    %v1311 = vmul.u32 %v1306, %v1307
    %v1312 = vmul.u32 %v1306, %v1308
    %v1313 = vshll.u32 %v1310, 16
    %v1314 = vshrl.u32 %v1310, 16
    %v1315 = vshll.u32 %v1311, 16
    %v1316 = vshrl.u32 %v1311, 16
    %vm1317 = vc.u32 %v1309, %v1313
    %v1318 = vsel %vm1317, 1, 0
    %v1319 = vadd.s32 %v1309, %v1313
    %v1320 = vadd.s32 %v1312, %v1318
    %vm1321 = vc.u32 %v1319, %v1315
    %v1322 = vsel %vm1321, 1, 0
    %v1323 = vadd.s32 %v1319, %v1315
    %v1324 = vadd.s32 %v1320, %v1322
    %v1325 = vadd.s32 %v1324, %v1314
    %v1326 = vadd.s32 %v1325, %v1316
    %v1327 = vand.u32 %v1304, 65535
    %v1328 = vshrl.u32 %v1304, 16
    %v1329 = vand.u32 %v1299, 65535
    %v1330 = vshrl.u32 %v1299, 16
    %v1331 = vmul.u32 %v1327, %v1329
    %v1332 = vmul.u32 %v1327, %v1330
    %v1333 = vmul.u32 %v1328, %v1329
    %v1334 = vmul.u32 %v1328, %v1330
    %v1335 = vshll.u32 %v1332, 16
    %v1336 = vshrl.u32 %v1332, 16
    %v1337 = vshll.u32 %v1333, 16
    %v1338 = vshrl.u32 %v1333, 16
    %vm1339 = vc.u32 %v1331, %v1335
    %v1340 = vsel %vm1339, 1, 0
    %v1341 = vadd.s32 %v1331, %v1335
    %v1342 = vadd.s32 %v1334, %v1340
    %vm1343 = vc.u32 %v1341, %v1337
    %v1344 = vsel %vm1343, 1, 0
    %v1345 = vadd.s32 %v1341, %v1337
    %v1346 = vadd.s32 %v1342, %v1344
    %v1347 = vadd.s32 %v1346, %v1336
    %v1348 = vadd.s32 %v1347, %v1338
    %v1349 = vmul.u32 %v1304, %v1295
    %v1350 = vadd.s32 %v1326, %v1345
    %vm1351 = vc.u32 %v1326, %v1345
    %v1352 = vadd.s32 %v1348, 1
    %v1353 = vsel %vm1351, %v1352, %v1348
    %v1354 = vadd.s32 %v1349, %v1353
    %v1355 = vadd.s32 %v1354, 536870912
    %v1356 = vshrl.u32 %v1355, 30
    %v1357 = vshll.u32 %v1356, 30
    %v1358 = vsub.s32 %v1354, %v1357
    %vm1359 = vcmp.lt.s32.totalorder %v1358, 0
    %v1360 = vsub.s32 0, %v1358
    %v1361 = vsel %vm1359, %v1360, %v1358
    %v1362 = vclz %v1361
    %v1363 = vsub.s32 %v1362, 2
    %vm1364 = vcmp.gt.s32.totalorder 0, %v1363
    %v1365 = vsel %vm1364, 0, %v1363
    %v1366 = vsub.s32 32, %v1365
    %v1367 = vshll.u32 %v1358, %v1365
    %v1368 = vshrl.u32 %v1350, %v1366
    %v1369 = vor.u32 %v1367, %v1368
    %v1370 = vsub.s32 4294967266, %v1365
    %v1371 = vadd.s32 %v1370, 127
    %v1372 = vshll.u32 %v1371, 23
    %v1373 = vor.u32 4788187, %v1372
    %v1374 = vand.u32 2147483647, %v1373
    %v1376 = vcvt.s32.f32 %v1369
    %v1377 = vmul.f32 %v1376, %v1374
    %v1378 = vxor.u32 %v1377, 2147483648
    %v1379 = vsel %vm1258, %v1378, %v1377
    %v1380 = vsub.s32 4, %v1356
    %v1381 = vsel %vm1258, %v1380, %v1356
    %v1382 = vsel %vm1257, %v177, %v1379
    %v1383 = vsel %vm1257, 0, %v1381
    %v1384 = vmul.f32 %v1382, %v1382
    %v1385 = vmul.f32 %v1384, -0.001358992
    %v1386 = vadd.f32 %v1385, 0.041655596
    %v1387 = vmul.f32 %v1384, %v1386
    %v1388 = vadd.f32 %v1387, -0.4999988
    %v1389 = vmul.f32 %v1384, %v1388
    %v1390 = vadd.f32 1.0, %v1389
    %v1391 = vmul.f32 %v1382, %v1382
    %v1392 = vmul.f32 %v1391, -0.00019511016
    %v1393 = vadd.f32 %v1392, 0.008332121
    %v1394 = vmul.f32 %v1391, %v1393
    %v1395 = vadd.f32 %v1394, -0.16666654
    %v1396 = vmul.f32 %v1391, %v1395
    %v1397 = vadd.f32 %v1396, 1.0
    %v1398 = vmul.f32 %v1397, %v1382
    %vm1399 = vweird.f32 %v177
    %v1400 = vand.u32 %v1383, 3
    %vm1401 = vcmp.lt.s32.totalorder %v1400, 2
    %vm1402 = vcmp.eq.s32.totalorder %v1400, 0
    %v1403 = vxor.u32 %v1398, 2147483648
    %v1404 = vsel %vm1402, %v1390, %v1403
    %vm1405 = vcmp.eq.s32.totalorder %v1400, 2
    %v1406 = vxor.u32 %v1390, 2147483648
    %v1407 = vsel %vm1405, %v1406, %v1398
    %v1408 = vsel %vm1401, %v1404, %v1407
    %v1409 = vsel %vm1399, nan, %v1408
    %v1410 = vld [vmem:[%s4] sm:$0xff]
    %v1411 = vld [vmem:[%s4 + $0x8] sm:$0xff]
    %v1412 = vld [vmem:[%s4 + $0x10] sm:$0xff]
    %v1413 = vld [vmem:[%s4 + $0x18] sm:$0xff]
    %v1414 = vld [vmem:[%s4 + $0x20] sm:$0xff]
    %v1415 = vld [vmem:[%s4 + $0x28] sm:$0xff]
    %v1416 = vld [vmem:[%s4 + $0x30] sm:$0xff]
    %v1417 = vld [vmem:[%s4 + $0x38] sm:$0xff]
    %v1418 = vld [vmem:[%s5] sm:$0x1]
    %v1420 = vperm.slane %v1418, 0
    %vm1422 = vcmask 523264
    %v1424 = vsel %vm1422, %v331, 0
    %v1427 = vsel %vm1422, %v485, 0
    %v1430 = vsel %vm1422, %v639, 0
    %v1433 = vsel %vm1422, %v793, 0
    %v1436 = vsel %vm1422, %v947, 0
    %v1439 = vsel %vm1422, %v1101, 0
    %v1442 = vsel %vm1422, %v1255, 0
    %v1445 = vsel %vm1422, %v1409, 0
    %1447 = vmatpush.msra.mxu0 0.0
    %1448 = vmatpush.msra.mxu0 0.0
    %1449 = vmatpush.msra.mxu0 0.0
    %1450 = vmatpush.msra.mxu0 0.0
    %1451 = vmatpush.msra.mxu0 0.0
    %1452 = vmatpush.msra.mxu0 0.0
    %1453 = vmatpush.msra.mxu0 0.0
    %1454 = vmatpush.msra.mxu0 0.0
    %1455 = vmatpush.msra.mxu0 %v1417
    %1456 = vmatpush.msra.mxu0 %v1416
    %1457 = vmatpush.msra.mxu0 %v1415
    %1458 = vmatpush.msra.mxu0 %v1414
    %1459 = vmatpush.msra.mxu0 %v1413
    %1460 = vmatpush.msra.mxu0 %v1412
    %1461 = vmatpush.msra.mxu0 %v1411
    %1462 = vmatpush.msra.mxu0 %v1410
    %1463 = vmatmul.f32.gmra.mxu0 %v1424
    %v1464 = vpop.f32.mrf.mxu0
    %v1465 = vadd.f32 %v1420, %v1464
    %1466 = vmatmul.f32.gmra.mxu0 %v1427
    %v1467 = vpop.f32.mrf.mxu0
    %v1468 = vadd.f32 %v1420, %v1467
    %1469 = vmatmul.f32.gmra.mxu0 %v1430
    %v1470 = vpop.f32.mrf.mxu0
    %v1471 = vadd.f32 %v1420, %v1470
    %1472 = vmatmul.f32.gmra.mxu0 %v1433
    %v1473 = vpop.f32.mrf.mxu0
    %v1474 = vadd.f32 %v1420, %v1473
    %1475 = vmatmul.f32.gmra.mxu0 %v1436
    %v1476 = vpop.f32.mrf.mxu0
    %v1477 = vadd.f32 %v1420, %v1476
    %1478 = vmatmul.f32.gmra.mxu0 %v1439
    %v1479 = vpop.f32.mrf.mxu0
    %v1480 = vadd.f32 %v1420, %v1479
    %1481 = vmatmul.f32.gmra.mxu0 %v1442
    %v1482 = vpop.f32.mrf.mxu0
    %v1483 = vadd.f32 %v1420, %v1482
    %1484 = vmatmul.f32.gmra.mxu0 %v1445
    %v1485 = vpop.f32.mrf.mxu0
    %v1486 = vadd.f32 %v1420, %v1485
    %1487 = vdwg.mxu0
    %v1488 = vmax.f32 %v1465, 0.0
    %v1489 = vmax.f32 %v1468, 0.0
    %v1490 = vmax.f32 %v1471, 0.0
    %v1491 = vmax.f32 %v1474, 0.0
    %v1492 = vmax.f32 %v1477, 0.0
    %v1493 = vmax.f32 %v1480, 0.0
    %v1494 = vmax.f32 %v1483, 0.0
    %v1495 = vmax.f32 %v1486, 0.0
    %v1497 = vrot.slane %v121, 1
    %v1498 = vrot.slane %v121, 2
    %v1499 = vrot.slane %v121, 3
    %v1500 = vrot.slane %v121, 4
    %v1501 = vrot.slane %v121, 5
    %v1502 = vrot.slane %v121, 6
    %v1503 = vrot.slane %v121, 7
    %v1504 = vperm.slane %v121, 0
    %v1505 = vperm.slane %v1497, 0
    %v1506 = vperm.slane %v1498, 0
    %v1507 = vperm.slane %v1499, 0
    %v1508 = vperm.slane %v1500, 0
    %v1509 = vperm.slane %v1501, 0
    %v1510 = vperm.slane %v1502, 0
    %v1511 = vperm.slane %v1503, 0
    %v1520 = vmul.f32 %v1504, %v1488
    %v1521 = vmul.f32 %v1505, %v1489
    %v1522 = vmul.f32 %v1506, %v1490
    %v1523 = vmul.f32 %v1507, %v1491
    %v1524 = vmul.f32 %v1508, %v1492
    %v1525 = vmul.f32 %v1509, %v1493
    %v1526 = vmul.f32 %v1510, %v1494
    %v1527 = vmul.f32 %v1511, %v1495
    %v1528 = vld [vmem:[%s6] sm:$0xff]
    %v1529 = vld [vmem:[%s6 + $0x8] sm:$0xff]
    %v1530 = vld [vmem:[%s6 + $0x10] sm:$0xff]
    %v1531 = vld [vmem:[%s6 + $0x18] sm:$0xff]
    %v1532 = vld [vmem:[%s6 + $0x20] sm:$0xff]
    %v1533 = vld [vmem:[%s6 + $0x28] sm:$0xff]
    %v1534 = vld [vmem:[%s6 + $0x30] sm:$0xff]
    %v1535 = vld [vmem:[%s6 + $0x38] sm:$0xff]
    %v1536 = vld [vmem:[%s6 + $0x40] sm:$0xff]
    %v1537 = vld [vmem:[%s6 + $0x48] sm:$0xff]
    %v1538 = vld [vmem:[%s6 + $0x50] sm:$0xff]
    %v1539 = vld [vmem:[%s6 + $0x58] sm:$0xff]
    %v1540 = vld [vmem:[%s6 + $0x60] sm:$0xff]
    %v1541 = vld [vmem:[%s6 + $0x68] sm:$0xff]
    %v1542 = vld [vmem:[%s6 + $0x70] sm:$0xff]
    %v1543 = vld [vmem:[%s6 + $0x78] sm:$0xff]
    %v1544 = vld [vmem:[%s7] sm:$0x1]
    %v1546 = vperm.slane %v1544, 0
    %1548 = vmatpush.msra.mxu0 %v1543
    %1549 = vmatpush.msra.mxu0 %v1542
    %1550 = vmatpush.msra.mxu0 %v1541
    %1551 = vmatpush.msra.mxu0 %v1540
    %1552 = vmatpush.msra.mxu0 %v1539
    %1553 = vmatpush.msra.mxu0 %v1538
    %1554 = vmatpush.msra.mxu0 %v1537
    %1555 = vmatpush.msra.mxu0 %v1536
    %1556 = vmatpush.msra.mxu0 %v1535
    %1557 = vmatpush.msra.mxu0 %v1534
    %1558 = vmatpush.msra.mxu0 %v1533
    %1559 = vmatpush.msra.mxu0 %v1532
    %1560 = vmatpush.msra.mxu0 %v1531
    %1561 = vmatpush.msra.mxu0 %v1530
    %1562 = vmatpush.msra.mxu0 %v1529
    %1563 = vmatpush.msra.mxu0 %v1528
    %1564 = vmatmul.f32.gmra.mxu0 %v1520
    %v1565 = vpop.f32.mrf.mxu0
    %v1566 = vadd.f32 %v1546, %v1565
    %1567 = vmatmul.f32.gmra.mxu0 %v1521
    %v1568 = vpop.f32.mrf.mxu0
    %v1569 = vadd.f32 %v1546, %v1568
    %1570 = vmatmul.f32.gmra.mxu0 %v1522
    %v1571 = vpop.f32.mrf.mxu0
    %v1572 = vadd.f32 %v1546, %v1571
    %1573 = vmatmul.f32.gmra.mxu0 %v1523
    %v1574 = vpop.f32.mrf.mxu0
    %v1575 = vadd.f32 %v1546, %v1574
    %1576 = vmatmul.f32.gmra.mxu0 %v1524
    %v1577 = vpop.f32.mrf.mxu0
    %v1578 = vadd.f32 %v1546, %v1577
    %1579 = vmatmul.f32.gmra.mxu0 %v1525
    %v1580 = vpop.f32.mrf.mxu0
    %v1581 = vadd.f32 %v1546, %v1580
    %1582 = vmatmul.f32.gmra.mxu0 %v1526
    %v1583 = vpop.f32.mrf.mxu0
    %v1584 = vadd.f32 %v1546, %v1583
    %1585 = vmatmul.f32.gmra.mxu0 %v1527
    %v1586 = vpop.f32.mrf.mxu0
    %v1587 = vadd.f32 %v1546, %v1586
    %1588 = vdwg.mxu0
    %v1589 = vmax.f32 %v1566, 0.0
    %v1590 = vmax.f32 %v1569, 0.0
    %v1591 = vmax.f32 %v1572, 0.0
    %v1592 = vmax.f32 %v1575, 0.0
    %v1593 = vmax.f32 %v1578, 0.0
    %v1594 = vmax.f32 %v1581, 0.0
    %v1595 = vmax.f32 %v1584, 0.0
    %v1596 = vmax.f32 %v1587, 0.0
    %v1597 = vld [vmem:[#allocation6] sm:$0xff]
    %v1598 = vld [vmem:[#allocation6 + $0x8] sm:$0xff]
    %v1599 = vld [vmem:[#allocation6 + $0x10] sm:$0xff]
    %v1600 = vld [vmem:[#allocation6 + $0x18] sm:$0xff]
    %v1601 = vld [vmem:[#allocation6 + $0x20] sm:$0xff]
    %v1602 = vld [vmem:[#allocation6 + $0x28] sm:$0xff]
    %v1603 = vld [vmem:[#allocation6 + $0x30] sm:$0xff]
    %v1604 = vld [vmem:[#allocation6 + $0x38] sm:$0xff]
    %v1605 = vld [vmem:[#allocation6 + $0x40] sm:$0xff]
    %v1606 = vld [vmem:[#allocation6 + $0x48] sm:$0xff]
    %v1607 = vld [vmem:[#allocation6 + $0x50] sm:$0xff]
    %v1608 = vld [vmem:[#allocation6 + $0x58] sm:$0xff]
    %v1609 = vld [vmem:[#allocation6 + $0x60] sm:$0xff]
    %v1610 = vld [vmem:[#allocation6 + $0x68] sm:$0xff]
    %v1611 = vld [vmem:[#allocation6 + $0x70] sm:$0xff]
    %v1612 = vld [vmem:[#allocation6 + $0x78] sm:$0xff]
    %v1613 = vld [vmem:[%s9] sm:$0x1]
    %v1615 = vperm.slane %v1613, 0
    %1617 = vmatpush.msra.mxu0 %v1612
    %1618 = vmatpush.msra.mxu0 %v1611
    %1619 = vmatpush.msra.mxu0 %v1610
    %1620 = vmatpush.msra.mxu0 %v1609
    %1621 = vmatpush.msra.mxu0 %v1608
    %1622 = vmatpush.msra.mxu0 %v1607
    %1623 = vmatpush.msra.mxu0 %v1606
    %1624 = vmatpush.msra.mxu0 %v1605
    %1625 = vmatpush.msra.mxu0 %v1604
    %1626 = vmatpush.msra.mxu0 %v1603
    %1627 = vmatpush.msra.mxu0 %v1602
    %1628 = vmatpush.msra.mxu0 %v1601
    %1629 = vmatpush.msra.mxu0 %v1600
    %1630 = vmatpush.msra.mxu0 %v1599
    %1631 = vmatpush.msra.mxu0 %v1598
    %1632 = vmatpush.msra.mxu0 %v1597
    %1633 = vmatmul.f32.gmra.mxu0 %v1589
    %v1634 = vpop.f32.mrf.mxu0
    %v1635 = vadd.f32 %v1615, %v1634
    %1636 = vmatmul.f32.gmra.mxu0 %v1590
    %v1637 = vpop.f32.mrf.mxu0
    %v1638 = vadd.f32 %v1615, %v1637
    %1639 = vmatmul.f32.gmra.mxu0 %v1591
    %v1640 = vpop.f32.mrf.mxu0
    %v1641 = vadd.f32 %v1615, %v1640
    %1642 = vmatmul.f32.gmra.mxu0 %v1592
    %v1643 = vpop.f32.mrf.mxu0
    %v1644 = vadd.f32 %v1615, %v1643
    %1645 = vmatmul.f32.gmra.mxu0 %v1593
    %v1646 = vpop.f32.mrf.mxu0
    %v1647 = vadd.f32 %v1615, %v1646
    %1648 = vmatmul.f32.gmra.mxu0 %v1594
    %v1649 = vpop.f32.mrf.mxu0
    %v1650 = vadd.f32 %v1615, %v1649
    %1651 = vmatmul.f32.gmra.mxu0 %v1595
    %v1652 = vpop.f32.mrf.mxu0
    %v1653 = vadd.f32 %v1615, %v1652
    %1654 = vmatmul.f32.gmra.mxu0 %v1596
    %v1655 = vpop.f32.mrf.mxu0
    %v1656 = vadd.f32 %v1615, %v1655
    %1657 = vdwg.mxu0
    %v1658 = vmax.f32 %v1635, 0.0
    %v1659 = vmax.f32 %v1638, 0.0
    %v1660 = vmax.f32 %v1641, 0.0
    %v1661 = vmax.f32 %v1644, 0.0
    %v1662 = vmax.f32 %v1647, 0.0
    %v1663 = vmax.f32 %v1650, 0.0
    %v1664 = vmax.f32 %v1653, 0.0
    %v1665 = vmax.f32 %v1656, 0.0
    %v1666 = vld [vmem:[%s10] sm:$0xff]
    %v1667 = vld [vmem:[%s10 + $0x8] sm:$0xff]
    %v1668 = vld [vmem:[%s10 + $0x10] sm:$0xff]
    %v1669 = vld [vmem:[%s10 + $0x18] sm:$0xff]
    %v1670 = vld [vmem:[%s10 + $0x20] sm:$0xff]
    %v1671 = vld [vmem:[%s10 + $0x28] sm:$0xff]
    %v1672 = vld [vmem:[%s10 + $0x30] sm:$0xff]
    %v1673 = vld [vmem:[%s10 + $0x38] sm:$0xff]
    %v1674 = vld [vmem:[%s10 + $0x40] sm:$0xff]
    %v1675 = vld [vmem:[%s10 + $0x48] sm:$0xff]
    %v1676 = vld [vmem:[%s10 + $0x50] sm:$0xff]
    %v1677 = vld [vmem:[%s10 + $0x58] sm:$0xff]
    %v1678 = vld [vmem:[%s10 + $0x60] sm:$0xff]
    %v1679 = vld [vmem:[%s10 + $0x68] sm:$0xff]
    %v1680 = vld [vmem:[%s10 + $0x70] sm:$0xff]
    %v1681 = vld [vmem:[%s10 + $0x78] sm:$0xff]
    %v1682 = vld [vmem:[%s11] sm:$0x1]
    %v1684 = vperm.slane %v1682, 0
    %1686 = vmatpush.msra.mxu0 %v1681
    %1687 = vmatpush.msra.mxu0 %v1680
    %1688 = vmatpush.msra.mxu0 %v1679
    %1689 = vmatpush.msra.mxu0 %v1678
    %1690 = vmatpush.msra.mxu0 %v1677
    %1691 = vmatpush.msra.mxu0 %v1676
    %1692 = vmatpush.msra.mxu0 %v1675
    %1693 = vmatpush.msra.mxu0 %v1674
    %1694 = vmatpush.msra.mxu0 %v1673
    %1695 = vmatpush.msra.mxu0 %v1672
    %1696 = vmatpush.msra.mxu0 %v1671
    %1697 = vmatpush.msra.mxu0 %v1670
    %1698 = vmatpush.msra.mxu0 %v1669
    %1699 = vmatpush.msra.mxu0 %v1668
    %1700 = vmatpush.msra.mxu0 %v1667
    %1701 = vmatpush.msra.mxu0 %v1666
    %1702 = vmatmul.f32.gmra.mxu0 %v1658
    %v1703 = vpop.f32.mrf.mxu0
    %v1704 = vadd.f32 %v1684, %v1703
    %1705 = vmatmul.f32.gmra.mxu0 %v1659
    %v1706 = vpop.f32.mrf.mxu0
    %v1707 = vadd.f32 %v1684, %v1706
    %1708 = vmatmul.f32.gmra.mxu0 %v1660
    %v1709 = vpop.f32.mrf.mxu0
    %v1710 = vadd.f32 %v1684, %v1709
    %1711 = vmatmul.f32.gmra.mxu0 %v1661
    %v1712 = vpop.f32.mrf.mxu0
    %v1713 = vadd.f32 %v1684, %v1712
    %1714 = vmatmul.f32.gmra.mxu0 %v1662
    %v1715 = vpop.f32.mrf.mxu0
    %v1716 = vadd.f32 %v1684, %v1715
    %1717 = vmatmul.f32.gmra.mxu0 %v1663
    %v1718 = vpop.f32.mrf.mxu0
    %v1719 = vadd.f32 %v1684, %v1718
    %1720 = vmatmul.f32.gmra.mxu0 %v1664
    %v1721 = vpop.f32.mrf.mxu0
    %v1722 = vadd.f32 %v1684, %v1721
    %1723 = vmatmul.f32.gmra.mxu0 %v1665
    %v1724 = vpop.f32.mrf.mxu0
    %v1725 = vadd.f32 %v1684, %v1724
    %1726 = vdwg.mxu0
    %vm1727 = vcmask 31744
    %1728 = vst.msk [vmem:[%s12] sm:$0xff] %vm1727, %v1704
    %1729 = vst.msk [vmem:[%s12 + $0x8] sm:$0xff] %vm1727, %v1707
    %1730 = vst.msk [vmem:[%s12 + $0x10] sm:$0xff] %vm1727, %v1710
    %1731 = vst.msk [vmem:[%s12 + $0x18] sm:$0xff] %vm1727, %v1713
    %1732 = vst.msk [vmem:[%s12 + $0x20] sm:$0xff] %vm1727, %v1716
    %1733 = vst.msk [vmem:[%s12 + $0x28] sm:$0xff] %vm1727, %v1719
    %1734 = vst.msk [vmem:[%s12 + $0x30] sm:$0xff] %vm1727, %v1722
    %1735 = vst.msk [vmem:[%s12 + $0x38] sm:$0xff] %vm1727, %v1725
    // Predicated region
    $region62: #{tpu_custom_call.1} parent=1 // pred_check
      _
    $region63: #{tpu_custom_call.1} parent=1 // pred_check_branch
      %1737 = sbr.rel (0) target = $region65
    $region64: #{tpu_custom_call.1} parent=1 // pred_region
      _
    $region65: #{tpu_custom_call.1} parent=1 // pred_fallthru
      _
    // Predicated region
    $region66: #{tpu_custom_call.1} parent=1 // pred_check
      _
    $region67: #{tpu_custom_call.1} parent=1 // pred_check_branch
      %1739 = sbr.rel (0) target = $region69
    $region68: #{tpu_custom_call.1} parent=1 // pred_region
      _
    $region69: #{tpu_custom_call.1} parent=1 // pred_fallthru
      _
    %1740 = vsyncpa [#allocation3], 1
    %1741 = vsyncpa [#allocation5], 1

</llo_original>
